<compile_context>
chip_gen: v7x
topology: tpu7x:2x2x1
jax: 0.10.0
libtpu: 0.0.40
codegen_flags: <defaults>
</compile_context>

<pallas_src>
import math
import numpy as np
import jax
import jax.numpy as jnp
from jax.experimental import pallas as pl
from jax.experimental.pallas import tpu as pltpu

UP, DOWN, UP_K, DOWN_K = 2, 2, 12, 12   # AntiAliasActivation defaults


def kaiser_sinc_filter1d(cutoff, half_width, kernel_size):
    """NumPy port of the torch helper (np.kaiser == torch.kaiser_window periodic=False)."""
    even = kernel_size % 2 == 0
    half_size = kernel_size // 2
    delta_f = 4 * half_width
    A = 2.285 * (half_size - 1) * math.pi * delta_f + 7.95
    if A > 50.0:
        beta = 0.1102 * (A - 8.7)
    elif A >= 21.0:
        beta = 0.5842 * (A - 21) ** 0.4 + 0.07886 * (A - 21.0)
    else:
        beta = 0.0
    window = np.kaiser(kernel_size, beta)
    if even:
        time = np.arange(-half_size, half_size) + 0.5
    else:
        time = np.arange(kernel_size) - half_size
    filt = 2 * cutoff * window * np.sinc(2 * cutoff * time)
    filt = filt / filt.sum()
    return filt.astype(np.float64)   # (K,)


def _round_up(v, m):
    return ((v + m - 1) // m) * m


def _make_kernel(w_up, w_dn, T, TB, row_blk):
    # Filter taps baked in as compile-time scalar constants; the x2 upsample
    # ratio is folded into the up-taps.
    wu2 = [2.0 * float(v) for v in w_up]
    wd = [float(v) for v in w_dn]
    assert len(wu2) == 12 and len(wd) == 12
    WE = TB + 6            # activated window: phase positions [t0-3, t0+TB+3)

    def snake(xw, off, n, a_e, ib):
        """Polyphase UpSample1d + SnakeBeta for n consecutive phase positions.

        xw column p holds x[X0 + p]; the produced column d corresponds to phase
        position g = X0 + off - 2 + d:
          E[d] = act( 2*sum_j w[2j+1]*x[g+2-j] )   (upsampled sample 2g)
          O[d] = act( 2*sum_j w[2j]  *x[g+3-j] )   (upsampled sample 2g+1)
        The zero-stuffed 2x signal is never materialized.
        """
        ue = wu2[1] * xw[:, off:off + n]
        uo = wu2[0] * xw[:, off + 1:off + 1 + n]
        for j in range(1, 6):
            ue = ue + wu2[2 * j + 1] * xw[:, off - j:off - j + n]
            uo = uo + wu2[2 * j] * xw[:, off + 1 - j:off + 1 - j + n]
        # SnakeBeta: u + 1/(exp(beta)+1e-9) * sin(u*exp(alpha))^2
        se = jnp.sin(ue * a_e)
        so = jnp.sin(uo * a_e)
        return ue + ib * (se * se), uo + ib * (so * so)

    def kernel(side_ref, xp_ref, xm_ref, xn_ref, out_ref, e_ref, o_ref):
        t0 = pl.program_id(1) * TB          # global start of this output block

        a_e = side_ref[:, 0:1]              # exp(alpha)            (R, 1)
        ib = side_ref[:, 1:2]               # 1 / (exp(beta)+1e-9)  (R, 1)
        A0 = side_ref[:, 2:3]               # activated upsampled sample 0
        AL = side_ref[:, 3:4]               # activated upsampled sample 2T-1

        # --- bulk: window cols [6, TB) -> phases [t0+3, t0+TB-3).  All FIR
        # taps are static slices of the main block (xm) alone: no halo concat,
        # no TB-wide staging copy (review item 1).
        Eb, Ob = snake(xm_ref[...], 5, TB - 6, a_e, ib)
        e_ref[:, 6:TB] = Eb
        o_ref[:, 6:TB] = Ob

        # --- left edge: window cols [0, 6) from a 16-column stitch around t0.
        xl = jnp.concatenate([xp_ref[:, 120:128], xm_ref[:, 0:8]], axis=1)
        El, Ol = snake(xl, 7, 6, a_e, ib)
        e_ref[:, 0:6] = El
        o_ref[:, 0:6] = Ol

        # --- right edge: window cols [TB, TB+6) around t0+TB.
        xr = jnp.concatenate([xm_ref[:, TB - 8:TB], xn_ref[:, 0:8]], axis=1)
        Er, Or = snake(xr, 7, 6, a_e, ib)
        e_ref[:, TB:WE] = Er
        o_ref[:, TB:WE] = Or

        # --- exact DownSample1d replicate-pad semantics at the *global* signal
        # edges: upsampled positions < 0 clamp to sample 0 (= A0), positions
        # > 2T-1 clamp to sample 2T-1 (= AL).  Gated so only the 1-2 blocks
        # touching the edges ever pay for it (review item 2); the predicate
        # `t0 + TB + 2 > T - 1` also covers the block-nT-2 corner case.
        @pl.when(jnp.logical_or(t0 < 3, t0 + TB + 2 > T - 1))
        def _():
            gp = jax.lax.broadcasted_iota(jnp.int32, (row_blk, WE), 1) + (t0 - 3)
            lo = gp < 0
            hi = gp > T - 1
            e = e_ref[...]
            o = o_ref[...]
            e_ref[...] = jnp.where(lo, A0, jnp.where(hi, AL, e))
            o_ref[...] = jnp.where(lo, A0, jnp.where(hi, AL, o))

        # --- DownSample1d(ratio=2, k=12), phase-wise stride-2 conv:
        #   y[t] = sum_j wd[2j+1]*E[t+j-2] + wd[2j]*O[t+j-3]
        # TODO(synk): per review items 6/7 (measurement-gated), the two FIRs
        # could be column-chunked for v5e vst pressure or moved to the MXU as
        # bf16 band-matmuls on v6e/v7x; kept on the f32 VPU for exactness.
        y = wd[1] * e_ref[:, 1:1 + TB] + wd[0] * o_ref[:, 0:TB]
        for j in range(1, 6):
            y = y + wd[2 * j + 1] * e_ref[:, j + 1:j + 1 + TB] \
                  + wd[2 * j] * o_ref[:, j:j + TB]
        out_ref[...] = y

    return kernel


def anti_alias_activation(x, alpha, beta, *, time_block=1024, row_block=256):
    """x: (B, C, T) float32; alpha, beta: (C,) raw SnakeBeta params (pre-exp)."""
    B, C, T = x.shape
    rows = B * C
    w_up = kaiser_sinc_filter1d(0.5 / UP, 0.6 / UP, UP_K)
    w_dn = kaiser_sinc_filter1d(0.5 / DOWN, 0.6 / DOWN, DOWN_K)

    # Lane-aligned time block (multiple of 128), clamped to the problem size.
    TB = max(128, min(_round_up(time_block, 128), _round_up(T, 128)))
    nb = TB // 128
    nT = -(-T // TB)
    T_pad = nT * TB

    ROW_BLK = min(_round_up(row_block, 8), _round_up(rows, 8))
    rows_p = _round_up(rows, ROW_BLK)
    # Megacore / 2-TC (v7x): if the whole problem would be a single grid step
    # but there are enough rows, split the row axis so both cores get work.
    if nT == 1 and rows_p // ROW_BLK == 1 and rows_p >= 16:
        ROW_BLK = _round_up(rows_p // 2, 8)
        rows_p = _round_up(rows, ROW_BLK)

    xf = x.reshape(rows, T).astype(jnp.float32)

    # Hoisted per-row scalars (exp / reciprocal done once, outside the kernel).
    a_e = jnp.exp(jnp.asarray(alpha, jnp.float32).reshape(-1))
    ib = 1.0 / (jnp.exp(jnp.asarray(beta, jnp.float32).reshape(-1)) + 1e-9)
    a_e = jnp.broadcast_to(a_e[None, :], (B, C)).reshape(rows)
    ib = jnp.broadcast_to(ib[None, :], (B, C)).reshape(rows)

    # Exact boundary values of the *activated* upsampled signal:
    #   A0 = act(u_even[0])  (upsampled sample 0), AL = act(u_odd[T-1]) (sample 2T-1)
    wu2 = [2.0 * float(v) for v in w_up]

    def _col(i):
        return xf[:, min(max(i, 0), T - 1)]

    u0 = sum(wu2[2 * j + 1] * _col(2 - j) for j in range(6))
    uL = sum(wu2[2 * j] * _col(T + 2 - j) for j in range(6))
    A0 = u0 + ib * jnp.sin(u0 * a_e) ** 2
    AL = uL + ib * jnp.sin(uL * a_e) ** 2
    side = jnp.stack([a_e, ib, A0, AL], axis=1)          # (rows, 4), one side DMA

    if rows_p != rows:
        # Padded rows get zeros everywhere (incl. a_e/ib/A0/AL).  They are only
        # multiplied/added in the kernel (never divided by) and cropped below.
        xf = jnp.pad(xf, ((0, rows_p - rows), (0, 0)))
        side = jnp.pad(side, ((0, rows_p - rows), (0, 0)))

    # Replicate-padded, lane-aligned copy of x (review item 5: left pad shrunk
    # from TB to 128 columns, parked at the END of the array):
    #   cols [0, T_pad)            : x[clamp(c)]          (signal + right replicate)
    #   cols [T_pad, T_pad+128)    : x[T-1]               (next-halo of last block)
    #   cols [T_pad+128, T_pad+256): x[0]                 (prev-halo of block 0)
    right = jnp.broadcast_to(xf[:, T - 1:T], (rows_p, T_pad - T + 128))
    left = jnp.broadcast_to(xf[:, 0:1], (rows_p, 128))
    x_ext = jnp.concatenate([xf, right, left], axis=1)    # (rows_p, T_pad + 256)

    LEFT_BLK = T_pad // 128 + 1      # 128-col block index of the left-replicate region

    kernel = _make_kernel(w_up, w_dn, T, TB, ROW_BLK)
    out = pl.pallas_call(
        kernel,
        out_shape=jax.ShapeDtypeStruct((rows_p, T_pad), jnp.float32),
        grid_spec=pltpu.PrefetchScalarGridSpec(
            num_scalar_prefetch=0,
            grid=(rows_p // ROW_BLK, nT),
            in_specs=[
                # packed [exp(alpha), 1/(exp(beta)+eps), A0, AL]
                pl.BlockSpec((ROW_BLK, 4), lambda r, t: (r, 0)),
                # prev-halo: 128 samples right before this time block
                # (block 0 reads the dedicated left-replicate region instead)
                pl.BlockSpec((ROW_BLK, 128),
                             lambda r, t: (r, jnp.where(t == 0, LEFT_BLK, t * nb - 1))),
                # main: the TB samples of this time block
                pl.BlockSpec((ROW_BLK, TB), lambda r, t: (r, t)),
                # next-halo: 128 samples right after this time block
                pl.BlockSpec((ROW_BLK, 128), lambda r, t: (r, (t + 1) * nb)),
            ],
            out_specs=pl.BlockSpec((ROW_BLK, TB), lambda r, t: (r, t)),  # lane-dense
            scratch_shapes=[pltpu.VMEM((ROW_BLK, TB + 6), jnp.float32),   # E window
                            pltpu.VMEM((ROW_BLK, TB + 6), jnp.float32)],  # O window
        ),
        compiler_params=pltpu.CompilerParams(
            dimension_semantics=("parallel", "parallel"),
            # ~12-20 MB actually used at TB=1024/ROW_BLK=256; cap kept below the
            # v7x 64 MiB physical VMEM per TensorCore (review item 4).
            vmem_limit_bytes=48 * 1024 * 1024,
        ),
    )(side, x_ext, x_ext, x_ext)
    return out[:rows, :T].reshape(B, C, T)


def _reference(x, alpha, beta):
    """Vectorized NumPy (float64) transcription of the PyTorch forward."""
    x = np.asarray(x, np.float64)
    B, C, T = x.shape
    w = kaiser_sinc_filter1d(0.5 / UP, 0.6 / UP, UP_K)
    wd = kaiser_sinc_filter1d(0.5 / DOWN, 0.6 / DOWN, DOWN_K)
    a_e = np.exp(np.asarray(alpha, np.float64))[None, :, None]
    b_e = np.exp(np.asarray(beta, np.float64))[None, :, None]

    # UpSample1d: replicate-pad 5|5, conv_transpose1d(stride=2), crop 15|15, *ratio
    xp = np.concatenate(
        [np.repeat(x[..., :1], 5, -1), x, np.repeat(x[..., -1:], 5, -1)], -1)
    N = T + 10
    full = np.zeros((B, C, 2 * (N - 1) + UP_K))
    for i in range(N):
        full[..., 2 * i:2 * i + UP_K] += xp[..., i:i + 1] * w
    u = UP * full[..., 15:15 + 2 * T]

    # SnakeBeta
    act = u + 1.0 / (b_e + 1e-9) * np.sin(u * a_e) ** 2

    # DownSample1d: replicate-pad 5|6, conv1d(stride=2)
    ap = np.concatenate(
        [np.repeat(act[..., :1], 5, -1), act, np.repeat(act[..., -1:], 6, -1)], -1)
    y = np.zeros((B, C, T))
    for k in range(DOWN_K):
        y = y + wd[k] * ap[..., k:k + 2 * T:2]
    return y


if __name__ == "__main__":
    key = jax.random.PRNGKey(0)
    kx, ka, kb = jax.random.split(key, 3)

    # Primary small case consistent with the module: B=2, C=4, T=16.
    B, C, T = 2, 4, 16
    x = jax.random.normal(kx, (B, C, T), dtype=jnp.float32)
    # SnakeBeta params are (1, C, 1) in the module (init zeros); small random
    # values exercise the per-channel broadcast too.
    alpha = 0.1 * jax.random.normal(ka, (C,), dtype=jnp.float32)
    beta = 0.1 * jax.random.normal(kb, (C,), dtype=jnp.float32)

    out = jax.block_until_ready(anti_alias_activation(x, alpha, beta))
    assert out.shape == (B, C, T)
    ref = _reference(np.asarray(x), np.asarray(alpha), np.asarray(beta))
    np.testing.assert_allclose(np.asarray(out), ref, rtol=2e-3, atol=3e-4)

    # Exercise: interior (no-clamp) blocks, partial last blocks, T not a
    # multiple of 128, row padding (rows not a multiple of 8), and the
    # single-step megacore row-split heuristic.
    for (Bb, Cc, Tt, tb, rb) in [(2, 3, 300, 128, 8),
                                 (1, 8, 640, 256, 256),
                                 (4, 64, 300, 1024, 256)]:
        kx2, ka2, kb2 = jax.random.split(jax.random.PRNGKey(Bb * 100 + Tt), 3)
        x2 = jax.random.normal(kx2, (Bb, Cc, Tt), dtype=jnp.float32)
        a2 = 0.1 * jax.random.normal(ka2, (Cc,), dtype=jnp.float32)
        b2 = 0.1 * jax.random.normal(kb2, (Cc,), dtype=jnp.float32)
        o2 = jax.block_until_ready(
            anti_alias_activation(x2, a2, b2, time_block=tb, row_block=rb))
        r2 = _reference(np.asarray(x2), np.asarray(a2), np.asarray(b2))
        np.testing.assert_allclose(np.asarray(o2), r2, rtol=2e-3, atol=3e-4)

    print("KERNEL_OK")
</pallas_src>

<mosaic_0001>
module attributes {stable_mosaic.version = 11 : i64} {
  func.func @kernel(%arg0: i32, %arg1: i32, %arg2: memref<8x4xf32, #tpu.memory_space<vmem>>, %arg3: memref<8x128xf32, #tpu.memory_space<vmem>>, %arg4: memref<8x128xf32, #tpu.memory_space<vmem>>, %arg5: memref<8x128xf32, #tpu.memory_space<vmem>>, %arg6: memref<8x128xf32, #tpu.memory_space<vmem>>, %arg7: memref<8x134xf32, #tpu.memory_space<vmem>>, %arg8: memref<8x134xf32, #tpu.memory_space<vmem>>) attributes {dimension_semantics = [#tpu.dimension_semantics<parallel>, #tpu.dimension_semantics<parallel>], iteration_bounds = array<i64: 1, 1>, scalar_prefetch = 0 : i64, scratch_operands = 2 : i64, tpu.core_type = #tpu.core_type<tc>, window_params = [{transform_indices = @transform_0, window_bounds = array<i64: 8, 4>}, {transform_indices = @transform_1, window_bounds = array<i64: 8, 128>}, {transform_indices = @transform_2, window_bounds = array<i64: 8, 128>}, {transform_indices = @transform_3, window_bounds = array<i64: 8, 128>}, {transform_indices = @transform_4, window_bounds = array<i64: 8, 128>}]} {
    %c128_i32 = arith.constant 128 : i32
    %0 = arith.muli %arg1, %c128_i32 : i32
    %c0 = arith.constant 0 : index
    %c0_0 = arith.constant 0 : index
    %1 = vector.load %arg2[%c0, %c0_0] : memref<8x4xf32, #tpu.memory_space<vmem>>, vector<8x1xf32>
    %c0_1 = arith.constant 0 : index
    %c1 = arith.constant 1 : index
    %2 = vector.load %arg2[%c0_1, %c1] : memref<8x4xf32, #tpu.memory_space<vmem>>, vector<8x1xf32>
    %c0_2 = arith.constant 0 : index
    %c2 = arith.constant 2 : index
    %3 = vector.load %arg2[%c0_2, %c2] : memref<8x4xf32, #tpu.memory_space<vmem>>, vector<8x1xf32>
    %c0_3 = arith.constant 0 : index
    %c3 = arith.constant 3 : index
    %4 = vector.load %arg2[%c0_3, %c3] : memref<8x4xf32, #tpu.memory_space<vmem>>, vector<8x1xf32>
    %c0_4 = arith.constant 0 : index
    %c0_5 = arith.constant 0 : index
    %5 = vector.load %arg4[%c0_4, %c0_5] : memref<8x128xf32, #tpu.memory_space<vmem>>, vector<8x128xf32>
    %6 = vector.extract_strided_slice %5 {offsets = [0, 5], sizes = [8, 122], strides = [1, 1]} : vector<8x128xf32> to vector<8x122xf32>
    %cst = arith.constant 0.0187789276 : f32
    %7 = vector.broadcast %cst : f32 to vector<8x122xf32>
    %8 = arith.mulf %7, %6 : vector<8x122xf32>
    %9 = vector.extract_strided_slice %5 {offsets = [0, 6], sizes = [8, 122], strides = [1, 1]} : vector<8x128xf32> to vector<8x122xf32>
    %cst_6 = arith.constant 0.00405793311 : f32
    %10 = vector.broadcast %cst_6 : f32 to vector<8x122xf32>
    %11 = arith.mulf %10, %9 : vector<8x122xf32>
    %12 = vector.extract_strided_slice %5 {offsets = [0, 4], sizes = [8, 122], strides = [1, 1]} : vector<8x128xf32> to vector<8x122xf32>
    %cst_7 = arith.constant -0.115314752 : f32
    %13 = vector.broadcast %cst_7 : f32 to vector<8x122xf32>
    %14 = arith.mulf %13, %12 : vector<8x122xf32>
    %15 = arith.addf %8, %14 : vector<8x122xf32>
    %16 = vector.extract_strided_slice %5 {offsets = [0, 5], sizes = [8, 122], strides = [1, 1]} : vector<8x128xf32> to vector<8x122xf32>
    %cst_8 = arith.constant -0.0510869287 : f32
    %17 = vector.broadcast %cst_8 : f32 to vector<8x122xf32>
    %18 = arith.mulf %17, %16 : vector<8x122xf32>
    %19 = arith.addf %11, %18 : vector<8x122xf32>
    %20 = vector.extract_strided_slice %5 {offsets = [0, 3], sizes = [8, 122], strides = [1, 1]} : vector<8x128xf32> to vector<8x122xf32>
    %cst_9 = arith.constant 0.886419594 : f32
    %21 = vector.broadcast %cst_9 : f32 to vector<8x122xf32>
    %22 = arith.mulf %21, %20 : vector<8x122xf32>
    %23 = arith.addf %15, %22 : vector<8x122xf32>
    %24 = vector.extract_strided_slice %5 {offsets = [0, 4], sizes = [8, 122], strides = [1, 1]} : vector<8x128xf32> to vector<8x122xf32>
    %cst_10 = arith.constant 0.257145226 : f32
    %25 = vector.broadcast %cst_10 : f32 to vector<8x122xf32>
    %26 = arith.mulf %25, %24 : vector<8x122xf32>
    %27 = arith.addf %19, %26 : vector<8x122xf32>
    %28 = vector.extract_strided_slice %5 {offsets = [0, 2], sizes = [8, 122], strides = [1, 1]} : vector<8x128xf32> to vector<8x122xf32>
    %cst_11 = arith.constant 0.257145226 : f32
    %29 = vector.broadcast %cst_11 : f32 to vector<8x122xf32>
    %30 = arith.mulf %29, %28 : vector<8x122xf32>
    %31 = arith.addf %23, %30 : vector<8x122xf32>
    %32 = vector.extract_strided_slice %5 {offsets = [0, 3], sizes = [8, 122], strides = [1, 1]} : vector<8x128xf32> to vector<8x122xf32>
    %cst_12 = arith.constant 0.886419594 : f32
    %33 = vector.broadcast %cst_12 : f32 to vector<8x122xf32>
    %34 = arith.mulf %33, %32 : vector<8x122xf32>
    %35 = arith.addf %27, %34 : vector<8x122xf32>
    %36 = vector.extract_strided_slice %5 {offsets = [0, 1], sizes = [8, 122], strides = [1, 1]} : vector<8x128xf32> to vector<8x122xf32>
    %cst_13 = arith.constant -0.0510869287 : f32
    %37 = vector.broadcast %cst_13 : f32 to vector<8x122xf32>
    %38 = arith.mulf %37, %36 : vector<8x122xf32>
    %39 = arith.addf %31, %38 : vector<8x122xf32>
    %40 = vector.extract_strided_slice %5 {offsets = [0, 2], sizes = [8, 122], strides = [1, 1]} : vector<8x128xf32> to vector<8x122xf32>
    %cst_14 = arith.constant -0.115314752 : f32
    %41 = vector.broadcast %cst_14 : f32 to vector<8x122xf32>
    %42 = arith.mulf %41, %40 : vector<8x122xf32>
    %43 = arith.addf %35, %42 : vector<8x122xf32>
    %44 = vector.extract_strided_slice %5 {offsets = [0, 0], sizes = [8, 122], strides = [1, 1]} : vector<8x128xf32> to vector<8x122xf32>
    %cst_15 = arith.constant 0.00405793311 : f32
    %45 = vector.broadcast %cst_15 : f32 to vector<8x122xf32>
    %46 = arith.mulf %45, %44 : vector<8x122xf32>
    %47 = arith.addf %39, %46 : vector<8x122xf32>
    %48 = vector.extract_strided_slice %5 {offsets = [0, 1], sizes = [8, 122], strides = [1, 1]} : vector<8x128xf32> to vector<8x122xf32>
    %cst_16 = arith.constant 0.0187789276 : f32
    %49 = vector.broadcast %cst_16 : f32 to vector<8x122xf32>
    %50 = arith.mulf %49, %48 : vector<8x122xf32>
    %51 = arith.addf %43, %50 : vector<8x122xf32>
    %52 = vector.broadcast %1 : vector<8x1xf32> to vector<8x122xf32>
    %53 = arith.mulf %47, %52 : vector<8x122xf32>
    %54 = math.sin %53 : vector<8x122xf32>
    %55 = vector.broadcast %1 : vector<8x1xf32> to vector<8x122xf32>
    %56 = arith.mulf %51, %55 : vector<8x122xf32>
    %57 = math.sin %56 : vector<8x122xf32>
    %58 = arith.mulf %54, %54 : vector<8x122xf32>
    %59 = vector.broadcast %2 : vector<8x1xf32> to vector<8x122xf32>
    %60 = arith.mulf %59, %58 : vector<8x122xf32>
    %61 = arith.addf %47, %60 : vector<8x122xf32>
    %62 = arith.mulf %57, %57 : vector<8x122xf32>
    %63 = vector.broadcast %2 : vector<8x1xf32> to vector<8x122xf32>
    %64 = arith.mulf %63, %62 : vector<8x122xf32>
    %65 = arith.addf %51, %64 : vector<8x122xf32>
    %c0_17 = arith.constant 0 : index
    %c6 = arith.constant 6 : index
    %66 = vector.load %arg7[%c0_17, %c6] : memref<8x134xf32, #tpu.memory_space<vmem>>, vector<8x122xf32>
    tpu.vector_store %arg7[%c0_17, %c6], %61 {strides = array<i32>} : memref<8x134xf32, #tpu.memory_space<vmem>>, vector<8x122xf32>,
    %c0_18 = arith.constant 0 : index
    %c6_19 = arith.constant 6 : index
    %67 = vector.load %arg8[%c0_18, %c6_19] : memref<8x134xf32, #tpu.memory_space<vmem>>, vector<8x122xf32>
    tpu.vector_store %arg8[%c0_18, %c6_19], %65 {strides = array<i32>} : memref<8x134xf32, #tpu.memory_space<vmem>>, vector<8x122xf32>,
    %c0_20 = arith.constant 0 : index
    %c120 = arith.constant 120 : index
    %68 = vector.load %arg3[%c0_20, %c120] : memref<8x128xf32, #tpu.memory_space<vmem>>, vector<8x8xf32>
    %c0_21 = arith.constant 0 : index
    %c0_22 = arith.constant 0 : index
    %69 = vector.load %arg4[%c0_21, %c0_22] : memref<8x128xf32, #tpu.memory_space<vmem>>, vector<8x8xf32>
    %70 = tpu.concatenate %68, %69 in 1 : vector<8x8xf32>, vector<8x8xf32> -> vector<8x16xf32>
    %71 = vector.extract_strided_slice %70 {offsets = [0, 7], sizes = [8, 6], strides = [1, 1]} : vector<8x16xf32> to vector<8x6xf32>
    %cst_23 = arith.constant 0.0187789276 : f32
    %72 = vector.broadcast %cst_23 : f32 to vector<8x6xf32>
    %73 = arith.mulf %72, %71 : vector<8x6xf32>
    %74 = vector.extract_strided_slice %70 {offsets = [0, 8], sizes = [8, 6], strides = [1, 1]} : vector<8x16xf32> to vector<8x6xf32>
    %cst_24 = arith.constant 0.00405793311 : f32
    %75 = vector.broadcast %cst_24 : f32 to vector<8x6xf32>
    %76 = arith.mulf %75, %74 : vector<8x6xf32>
    %77 = vector.extract_strided_slice %70 {offsets = [0, 6], sizes = [8, 6], strides = [1, 1]} : vector<8x16xf32> to vector<8x6xf32>
    %cst_25 = arith.constant -0.115314752 : f32
    %78 = vector.broadcast %cst_25 : f32 to vector<8x6xf32>
    %79 = arith.mulf %78, %77 : vector<8x6xf32>
    %80 = arith.addf %73, %79 : vector<8x6xf32>
    %81 = vector.extract_strided_slice %70 {offsets = [0, 7], sizes = [8, 6], strides = [1, 1]} : vector<8x16xf32> to vector<8x6xf32>
    %cst_26 = arith.constant -0.0510869287 : f32
    %82 = vector.broadcast %cst_26 : f32 to vector<8x6xf32>
    %83 = arith.mulf %82, %81 : vector<8x6xf32>
    %84 = arith.addf %76, %83 : vector<8x6xf32>
    %85 = vector.extract_strided_slice %70 {offsets = [0, 5], sizes = [8, 6], strides = [1, 1]} : vector<8x16xf32> to vector<8x6xf32>
    %cst_27 = arith.constant 0.886419594 : f32
    %86 = vector.broadcast %cst_27 : f32 to vector<8x6xf32>
    %87 = arith.mulf %86, %85 : vector<8x6xf32>
    %88 = arith.addf %80, %87 : vector<8x6xf32>
    %89 = vector.extract_strided_slice %70 {offsets = [0, 6], sizes = [8, 6], strides = [1, 1]} : vector<8x16xf32> to vector<8x6xf32>
    %cst_28 = arith.constant 0.257145226 : f32
    %90 = vector.broadcast %cst_28 : f32 to vector<8x6xf32>
    %91 = arith.mulf %90, %89 : vector<8x6xf32>
    %92 = arith.addf %84, %91 : vector<8x6xf32>
    %93 = vector.extract_strided_slice %70 {offsets = [0, 4], sizes = [8, 6], strides = [1, 1]} : vector<8x16xf32> to vector<8x6xf32>
    %cst_29 = arith.constant 0.257145226 : f32
    %94 = vector.broadcast %cst_29 : f32 to vector<8x6xf32>
    %95 = arith.mulf %94, %93 : vector<8x6xf32>
    %96 = arith.addf %88, %95 : vector<8x6xf32>
    %97 = vector.extract_strided_slice %70 {offsets = [0, 5], sizes = [8, 6], strides = [1, 1]} : vector<8x16xf32> to vector<8x6xf32>
    %cst_30 = arith.constant 0.886419594 : f32
    %98 = vector.broadcast %cst_30 : f32 to vector<8x6xf32>
    %99 = arith.mulf %98, %97 : vector<8x6xf32>
    %100 = arith.addf %92, %99 : vector<8x6xf32>
    %101 = vector.extract_strided_slice %70 {offsets = [0, 3], sizes = [8, 6], strides = [1, 1]} : vector<8x16xf32> to vector<8x6xf32>
    %cst_31 = arith.constant -0.0510869287 : f32
    %102 = vector.broadcast %cst_31 : f32 to vector<8x6xf32>
    %103 = arith.mulf %102, %101 : vector<8x6xf32>
    %104 = arith.addf %96, %103 : vector<8x6xf32>
    %105 = vector.extract_strided_slice %70 {offsets = [0, 4], sizes = [8, 6], strides = [1, 1]} : vector<8x16xf32> to vector<8x6xf32>
    %cst_32 = arith.constant -0.115314752 : f32
    %106 = vector.broadcast %cst_32 : f32 to vector<8x6xf32>
    %107 = arith.mulf %106, %105 : vector<8x6xf32>
    %108 = arith.addf %100, %107 : vector<8x6xf32>
    %109 = vector.extract_strided_slice %70 {offsets = [0, 2], sizes = [8, 6], strides = [1, 1]} : vector<8x16xf32> to vector<8x6xf32>
    %cst_33 = arith.constant 0.00405793311 : f32
    %110 = vector.broadcast %cst_33 : f32 to vector<8x6xf32>
    %111 = arith.mulf %110, %109 : vector<8x6xf32>
    %112 = arith.addf %104, %111 : vector<8x6xf32>
    %113 = vector.extract_strided_slice %70 {offsets = [0, 3], sizes = [8, 6], strides = [1, 1]} : vector<8x16xf32> to vector<8x6xf32>
    %cst_34 = arith.constant 0.0187789276 : f32
    %114 = vector.broadcast %cst_34 : f32 to vector<8x6xf32>
    %115 = arith.mulf %114, %113 : vector<8x6xf32>
    %116 = arith.addf %108, %115 : vector<8x6xf32>
    %117 = vector.broadcast %1 : vector<8x1xf32> to vector<8x6xf32>
    %118 = arith.mulf %112, %117 : vector<8x6xf32>
    %119 = math.sin %118 : vector<8x6xf32>
    %120 = vector.broadcast %1 : vector<8x1xf32> to vector<8x6xf32>
    %121 = arith.mulf %116, %120 : vector<8x6xf32>
    %122 = math.sin %121 : vector<8x6xf32>
    %123 = arith.mulf %119, %119 : vector<8x6xf32>
    %124 = vector.broadcast %2 : vector<8x1xf32> to vector<8x6xf32>
    %125 = arith.mulf %124, %123 : vector<8x6xf32>
    %126 = arith.addf %112, %125 : vector<8x6xf32>
    %127 = arith.mulf %122, %122 : vector<8x6xf32>
    %128 = vector.broadcast %2 : vector<8x1xf32> to vector<8x6xf32>
    %129 = arith.mulf %128, %127 : vector<8x6xf32>
    %130 = arith.addf %116, %129 : vector<8x6xf32>
    %c0_35 = arith.constant 0 : index
    %c0_36 = arith.constant 0 : index
    %131 = vector.load %arg7[%c0_35, %c0_36] : memref<8x134xf32, #tpu.memory_space<vmem>>, vector<8x6xf32>
    tpu.vector_store %arg7[%c0_35, %c0_36], %126 {strides = array<i32>} : memref<8x134xf32, #tpu.memory_space<vmem>>, vector<8x6xf32>,
    %c0_37 = arith.constant 0 : index
    %c0_38 = arith.constant 0 : index
    %132 = vector.load %arg8[%c0_37, %c0_38] : memref<8x134xf32, #tpu.memory_space<vmem>>, vector<8x6xf32>
    tpu.vector_store %arg8[%c0_37, %c0_38], %130 {strides = array<i32>} : memref<8x134xf32, #tpu.memory_space<vmem>>, vector<8x6xf32>,
    %c0_39 = arith.constant 0 : index
    %c120_40 = arith.constant 120 : index
    %133 = vector.load %arg4[%c0_39, %c120_40] : memref<8x128xf32, #tpu.memory_space<vmem>>, vector<8x8xf32>
    %c0_41 = arith.constant 0 : index
    %c0_42 = arith.constant 0 : index
    %134 = vector.load %arg5[%c0_41, %c0_42] : memref<8x128xf32, #tpu.memory_space<vmem>>, vector<8x8xf32>
    %135 = tpu.concatenate %133, %134 in 1 : vector<8x8xf32>, vector<8x8xf32> -> vector<8x16xf32>
    %136 = vector.extract_strided_slice %135 {offsets = [0, 7], sizes = [8, 6], strides = [1, 1]} : vector<8x16xf32> to vector<8x6xf32>
    %cst_43 = arith.constant 0.0187789276 : f32
    %137 = vector.broadcast %cst_43 : f32 to vector<8x6xf32>
    %138 = arith.mulf %137, %136 : vector<8x6xf32>
    %139 = vector.extract_strided_slice %135 {offsets = [0, 8], sizes = [8, 6], strides = [1, 1]} : vector<8x16xf32> to vector<8x6xf32>
    %cst_44 = arith.constant 0.00405793311 : f32
    %140 = vector.broadcast %cst_44 : f32 to vector<8x6xf32>
    %141 = arith.mulf %140, %139 : vector<8x6xf32>
    %142 = vector.extract_strided_slice %135 {offsets = [0, 6], sizes = [8, 6], strides = [1, 1]} : vector<8x16xf32> to vector<8x6xf32>
    %cst_45 = arith.constant -0.115314752 : f32
    %143 = vector.broadcast %cst_45 : f32 to vector<8x6xf32>
    %144 = arith.mulf %143, %142 : vector<8x6xf32>
    %145 = arith.addf %138, %144 : vector<8x6xf32>
    %146 = vector.extract_strided_slice %135 {offsets = [0, 7], sizes = [8, 6], strides = [1, 1]} : vector<8x16xf32> to vector<8x6xf32>
    %cst_46 = arith.constant -0.0510869287 : f32
    %147 = vector.broadcast %cst_46 : f32 to vector<8x6xf32>
    %148 = arith.mulf %147, %146 : vector<8x6xf32>
    %149 = arith.addf %141, %148 : vector<8x6xf32>
    %150 = vector.extract_strided_slice %135 {offsets = [0, 5], sizes = [8, 6], strides = [1, 1]} : vector<8x16xf32> to vector<8x6xf32>
    %cst_47 = arith.constant 0.886419594 : f32
    %151 = vector.broadcast %cst_47 : f32 to vector<8x6xf32>
    %152 = arith.mulf %151, %150 : vector<8x6xf32>
    %153 = arith.addf %145, %152 : vector<8x6xf32>
    %154 = vector.extract_strided_slice %135 {offsets = [0, 6], sizes = [8, 6], strides = [1, 1]} : vector<8x16xf32> to vector<8x6xf32>
    %cst_48 = arith.constant 0.257145226 : f32
    %155 = vector.broadcast %cst_48 : f32 to vector<8x6xf32>
    %156 = arith.mulf %155, %154 : vector<8x6xf32>
    %157 = arith.addf %149, %156 : vector<8x6xf32>
    %158 = vector.extract_strided_slice %135 {offsets = [0, 4], sizes = [8, 6], strides = [1, 1]} : vector<8x16xf32> to vector<8x6xf32>
    %cst_49 = arith.constant 0.257145226 : f32
    %159 = vector.broadcast %cst_49 : f32 to vector<8x6xf32>
    %160 = arith.mulf %159, %158 : vector<8x6xf32>
    %161 = arith.addf %153, %160 : vector<8x6xf32>
    %162 = vector.extract_strided_slice %135 {offsets = [0, 5], sizes = [8, 6], strides = [1, 1]} : vector<8x16xf32> to vector<8x6xf32>
    %cst_50 = arith.constant 0.886419594 : f32
    %163 = vector.broadcast %cst_50 : f32 to vector<8x6xf32>
    %164 = arith.mulf %163, %162 : vector<8x6xf32>
    %165 = arith.addf %157, %164 : vector<8x6xf32>
    %166 = vector.extract_strided_slice %135 {offsets = [0, 3], sizes = [8, 6], strides = [1, 1]} : vector<8x16xf32> to vector<8x6xf32>
    %cst_51 = arith.constant -0.0510869287 : f32
    %167 = vector.broadcast %cst_51 : f32 to vector<8x6xf32>
    %168 = arith.mulf %167, %166 : vector<8x6xf32>
    %169 = arith.addf %161, %168 : vector<8x6xf32>
    %170 = vector.extract_strided_slice %135 {offsets = [0, 4], sizes = [8, 6], strides = [1, 1]} : vector<8x16xf32> to vector<8x6xf32>
    %cst_52 = arith.constant -0.115314752 : f32
    %171 = vector.broadcast %cst_52 : f32 to vector<8x6xf32>
    %172 = arith.mulf %171, %170 : vector<8x6xf32>
    %173 = arith.addf %165, %172 : vector<8x6xf32>
    %174 = vector.extract_strided_slice %135 {offsets = [0, 2], sizes = [8, 6], strides = [1, 1]} : vector<8x16xf32> to vector<8x6xf32>
    %cst_53 = arith.constant 0.00405793311 : f32
    %175 = vector.broadcast %cst_53 : f32 to vector<8x6xf32>
    %176 = arith.mulf %175, %174 : vector<8x6xf32>
    %177 = arith.addf %169, %176 : vector<8x6xf32>
    %178 = vector.extract_strided_slice %135 {offsets = [0, 3], sizes = [8, 6], strides = [1, 1]} : vector<8x16xf32> to vector<8x6xf32>
    %cst_54 = arith.constant 0.0187789276 : f32
    %179 = vector.broadcast %cst_54 : f32 to vector<8x6xf32>
    %180 = arith.mulf %179, %178 : vector<8x6xf32>
    %181 = arith.addf %173, %180 : vector<8x6xf32>
    %182 = vector.broadcast %1 : vector<8x1xf32> to vector<8x6xf32>
    %183 = arith.mulf %177, %182 : vector<8x6xf32>
    %184 = math.sin %183 : vector<8x6xf32>
    %185 = vector.broadcast %1 : vector<8x1xf32> to vector<8x6xf32>
    %186 = arith.mulf %181, %185 : vector<8x6xf32>
    %187 = math.sin %186 : vector<8x6xf32>
    %188 = arith.mulf %184, %184 : vector<8x6xf32>
    %189 = vector.broadcast %2 : vector<8x1xf32> to vector<8x6xf32>
    %190 = arith.mulf %189, %188 : vector<8x6xf32>
    %191 = arith.addf %177, %190 : vector<8x6xf32>
    %192 = arith.mulf %187, %187 : vector<8x6xf32>
    %193 = vector.broadcast %2 : vector<8x1xf32> to vector<8x6xf32>
    %194 = arith.mulf %193, %192 : vector<8x6xf32>
    %195 = arith.addf %181, %194 : vector<8x6xf32>
    %c0_55 = arith.constant 0 : index
    %c128 = arith.constant 128 : index
    %196 = vector.load %arg7[%c0_55, %c128] : memref<8x134xf32, #tpu.memory_space<vmem>>, vector<8x6xf32>
    tpu.vector_store %arg7[%c0_55, %c128], %191 {strides = array<i32>} : memref<8x134xf32, #tpu.memory_space<vmem>>, vector<8x6xf32>,
    %c0_56 = arith.constant 0 : index
    %c128_57 = arith.constant 128 : index
    %197 = vector.load %arg8[%c0_56, %c128_57] : memref<8x134xf32, #tpu.memory_space<vmem>>, vector<8x6xf32>
    tpu.vector_store %arg8[%c0_56, %c128_57], %195 {strides = array<i32>} : memref<8x134xf32, #tpu.memory_space<vmem>>, vector<8x6xf32>,
    %c3_i32 = arith.constant 3 : i32
    %198 = arith.cmpi slt, %0, %c3_i32 : i32
    %c128_i32_58 = arith.constant 128 : i32
    %199 = arith.addi %0, %c128_i32_58 : i32
    %c2_i32 = arith.constant 2 : i32
    %200 = arith.addi %199, %c2_i32 : i32
    %c15_i32 = arith.constant 15 : i32
    %201 = arith.cmpi sgt, %200, %c15_i32 : i32
    %202 = arith.ori %198, %201 : i1
    %203 = arith.extui %202 : i1 to i32
    %c0_i32 = arith.constant 0 : i32
    %204 = arith.cmpi ne, %203, %c0_i32 : i32
    scf.if %204 {
      %253 = tpu.iota {dimensions = array<i32: 1>} : vector<8x134xi32>
      %c3_i32_95 = arith.constant 3 : i32
      %254 = arith.subi %0, %c3_i32_95 : i32
      %255 = vector.broadcast %254 : i32 to vector<8x134xi32>
      %256 = arith.addi %253, %255 : vector<8x134xi32>
      %c0_i32_96 = arith.constant 0 : i32
      %257 = vector.broadcast %c0_i32_96 : i32 to vector<8x134xi32>
      %258 = arith.cmpi slt, %256, %257 : vector<8x134xi32>
      %c15_i32_97 = arith.constant 15 : i32
      %259 = vector.broadcast %c15_i32_97 : i32 to vector<8x134xi32>
      %260 = arith.cmpi sgt, %256, %259 : vector<8x134xi32>
      %c0_98 = arith.constant 0 : index
      %c0_99 = arith.constant 0 : index
      %261 = vector.load %arg7[%c0_98, %c0_99] : memref<8x134xf32, #tpu.memory_space<vmem>>, vector<8x134xf32>
      %c0_100 = arith.constant 0 : index
      %c0_101 = arith.constant 0 : index
      %262 = vector.load %arg8[%c0_100, %c0_101] : memref<8x134xf32, #tpu.memory_space<vmem>>, vector<8x134xf32>
      %263 = vector.shape_cast %4 : vector<8x1xf32> to vector<8x1xf32>
      %264 = vector.broadcast %263 : vector<8x1xf32> to vector<8x134xf32>
      %265 = arith.select %260, %264, %261 : vector<8x134xi1>, vector<8x134xf32>
      %266 = vector.shape_cast %3 : vector<8x1xf32> to vector<8x1xf32>
      %267 = vector.broadcast %266 : vector<8x1xf32> to vector<8x134xf32>
      %268 = arith.select %258, %267, %265 : vector<8x134xi1>, vector<8x134xf32>
      %c0_102 = arith.constant 0 : index
      %c0_103 = arith.constant 0 : index
      %269 = vector.load %arg7[%c0_102, %c0_103] : memref<8x134xf32, #tpu.memory_space<vmem>>, vector<8x134xf32>
      tpu.vector_store %arg7[%c0_102, %c0_103], %268 {strides = array<i32>} : memref<8x134xf32, #tpu.memory_space<vmem>>, vector<8x134xf32>,
      %270 = vector.shape_cast %4 : vector<8x1xf32> to vector<8x1xf32>
      %271 = vector.broadcast %270 : vector<8x1xf32> to vector<8x134xf32>
      %272 = arith.select %260, %271, %262 : vector<8x134xi1>, vector<8x134xf32>
      %273 = vector.shape_cast %3 : vector<8x1xf32> to vector<8x1xf32>
      %274 = vector.broadcast %273 : vector<8x1xf32> to vector<8x134xf32>
      %275 = arith.select %258, %274, %272 : vector<8x134xi1>, vector<8x134xf32>
      %c0_104 = arith.constant 0 : index
      %c0_105 = arith.constant 0 : index
      %276 = vector.load %arg8[%c0_104, %c0_105] : memref<8x134xf32, #tpu.memory_space<vmem>>, vector<8x134xf32>
      tpu.vector_store %arg8[%c0_104, %c0_105], %275 {strides = array<i32>} : memref<8x134xf32, #tpu.memory_space<vmem>>, vector<8x134xf32>,
    } else {
    }
    %c0_59 = arith.constant 0 : index
    %c1_60 = arith.constant 1 : index
    %205 = vector.load %arg7[%c0_59, %c1_60] : memref<8x134xf32, #tpu.memory_space<vmem>>, vector<8x128xf32>
    %cst_61 = arith.constant 0.00938946381 : f32
    %206 = vector.broadcast %cst_61 : f32 to vector<8x128xf32>
    %207 = arith.mulf %206, %205 : vector<8x128xf32>
    %c0_62 = arith.constant 0 : index
    %c0_63 = arith.constant 0 : index
    %208 = vector.load %arg8[%c0_62, %c0_63] : memref<8x134xf32, #tpu.memory_space<vmem>>, vector<8x128xf32>
    %cst_64 = arith.constant 0.00202896656 : f32
    %209 = vector.broadcast %cst_64 : f32 to vector<8x128xf32>
    %210 = arith.mulf %209, %208 : vector<8x128xf32>
    %211 = arith.addf %207, %210 : vector<8x128xf32>
    %c0_65 = arith.constant 0 : index
    %c2_66 = arith.constant 2 : index
    %212 = vector.load %arg7[%c0_65, %c2_66] : memref<8x134xf32, #tpu.memory_space<vmem>>, vector<8x128xf32>
    %cst_67 = arith.constant -0.0576573759 : f32
    %213 = vector.broadcast %cst_67 : f32 to vector<8x128xf32>
    %214 = arith.mulf %213, %212 : vector<8x128xf32>
    %215 = arith.addf %211, %214 : vector<8x128xf32>
    %c0_68 = arith.constant 0 : index
    %c1_69 = arith.constant 1 : index
    %216 = vector.load %arg8[%c0_68, %c1_69] : memref<8x134xf32, #tpu.memory_space<vmem>>, vector<8x128xf32>
    %cst_70 = arith.constant -0.0255434643 : f32
    %217 = vector.broadcast %cst_70 : f32 to vector<8x128xf32>
    %218 = arith.mulf %217, %216 : vector<8x128xf32>
    %219 = arith.addf %215, %218 : vector<8x128xf32>
    %c0_71 = arith.constant 0 : index
    %c3_72 = arith.constant 3 : index
    %220 = vector.load %arg7[%c0_71, %c3_72] : memref<8x134xf32, #tpu.memory_space<vmem>>, vector<8x128xf32>
    %cst_73 = arith.constant 0.443209797 : f32
    %221 = vector.broadcast %cst_73 : f32 to vector<8x128xf32>
    %222 = arith.mulf %221, %220 : vector<8x128xf32>
    %223 = arith.addf %219, %222 : vector<8x128xf32>
    %c0_74 = arith.constant 0 : index
    %c2_75 = arith.constant 2 : index
    %224 = vector.load %arg8[%c0_74, %c2_75] : memref<8x134xf32, #tpu.memory_space<vmem>>, vector<8x128xf32>
    %cst_76 = arith.constant 0.128572613 : f32
    %225 = vector.broadcast %cst_76 : f32 to vector<8x128xf32>
    %226 = arith.mulf %225, %224 : vector<8x128xf32>
    %227 = arith.addf %223, %226 : vector<8x128xf32>
    %c0_77 = arith.constant 0 : index
    %c4 = arith.constant 4 : index
    %228 = vector.load %arg7[%c0_77, %c4] : memref<8x134xf32, #tpu.memory_space<vmem>>, vector<8x128xf32>
    %cst_78 = arith.constant 0.128572613 : f32
    %229 = vector.broadcast %cst_78 : f32 to vector<8x128xf32>
    %230 = arith.mulf %229, %228 : vector<8x128xf32>
    %231 = arith.addf %227, %230 : vector<8x128xf32>
    %c0_79 = arith.constant 0 : index
    %c3_80 = arith.constant 3 : index
    %232 = vector.load %arg8[%c0_79, %c3_80] : memref<8x134xf32, #tpu.memory_space<vmem>>, vector<8x128xf32>
    %cst_81 = arith.constant 0.443209797 : f32
    %233 = vector.broadcast %cst_81 : f32 to vector<8x128xf32>
    %234 = arith.mulf %233, %232 : vector<8x128xf32>
    %235 = arith.addf %231, %234 : vector<8x128xf32>
    %c0_82 = arith.constant 0 : index
    %c5 = arith.constant 5 : index
    %236 = vector.load %arg7[%c0_82, %c5] : memref<8x134xf32, #tpu.memory_space<vmem>>, vector<8x128xf32>
    %cst_83 = arith.constant -0.0255434643 : f32
    %237 = vector.broadcast %cst_83 : f32 to vector<8x128xf32>
    %238 = arith.mulf %237, %236 : vector<8x128xf32>
    %239 = arith.addf %235, %238 : vector<8x128xf32>
    %c0_84 = arith.constant 0 : index
    %c4_85 = arith.constant 4 : index
    %240 = vector.load %arg8[%c0_84, %c4_85] : memref<8x134xf32, #tpu.memory_space<vmem>>, vector<8x128xf32>
    %cst_86 = arith.constant -0.0576573759 : f32
    %241 = vector.broadcast %cst_86 : f32 to vector<8x128xf32>
    %242 = arith.mulf %241, %240 : vector<8x128xf32>
    %243 = arith.addf %239, %242 : vector<8x128xf32>
    %c0_87 = arith.constant 0 : index
    %c6_88 = arith.constant 6 : index
    %244 = vector.load %arg7[%c0_87, %c6_88] : memref<8x134xf32, #tpu.memory_space<vmem>>, vector<8x128xf32>
    %cst_89 = arith.constant 0.00202896656 : f32
    %245 = vector.broadcast %cst_89 : f32 to vector<8x128xf32>
    %246 = arith.mulf %245, %244 : vector<8x128xf32>
    %247 = arith.addf %243, %246 : vector<8x128xf32>
    %c0_90 = arith.constant 0 : index
    %c5_91 = arith.constant 5 : index
    %248 = vector.load %arg8[%c0_90, %c5_91] : memref<8x134xf32, #tpu.memory_space<vmem>>, vector<8x128xf32>
    %cst_92 = arith.constant 0.00938946381 : f32
    %249 = vector.broadcast %cst_92 : f32 to vector<8x128xf32>
    %250 = arith.mulf %249, %248 : vector<8x128xf32>
    %251 = arith.addf %247, %250 : vector<8x128xf32>
    %c0_93 = arith.constant 0 : index
    %c0_94 = arith.constant 0 : index
    %252 = vector.load %arg6[%c0_93, %c0_94] : memref<8x128xf32, #tpu.memory_space<vmem>>, vector<8x128xf32>
    tpu.vector_store %arg6[%c0_93, %c0_94], %251 {strides = array<i32>} : memref<8x128xf32, #tpu.memory_space<vmem>>, vector<8x128xf32>,
    return
  }
  func.func @transform_0(%arg0: i32, %arg1: i32) -> (i32, i32) {
    %c0_i32 = arith.constant 0 : i32
    %c0_i32_0 = arith.constant 0 : i32
    return %arg0, %c0_i32 : i32, i32
  }
  func.func @transform_1(%arg0: i32, %arg1: i32) -> (i32, i32) {
    %c0_i32 = arith.constant 0 : i32
    %0 = arith.cmpi eq, %arg1, %c0_i32 : i32
    %c1_i32 = arith.constant 1 : i32
    %1 = arith.muli %arg1, %c1_i32 : i32
    %c1_i32_0 = arith.constant 1 : i32
    %2 = arith.subi %1, %c1_i32_0 : i32
    %c2_i32 = arith.constant 2 : i32
    %3 = arith.select %0, %c2_i32, %2 : i32
    %c0_i32_1 = arith.constant 0 : i32
    return %arg0, %3 : i32, i32
  }
  func.func @transform_2(%arg0: i32, %arg1: i32) -> (i32, i32) {
    %c0_i32 = arith.constant 0 : i32
    return %arg0, %arg1 : i32, i32
  }
  func.func @transform_3(%arg0: i32, %arg1: i32) -> (i32, i32) {
    %c1_i32 = arith.constant 1 : i32
    %0 = arith.addi %arg1, %c1_i32 : i32
    %c1_i32_0 = arith.constant 1 : i32
    %1 = arith.muli %0, %c1_i32_0 : i32
    %c0_i32 = arith.constant 0 : i32
    return %arg0, %1 : i32, i32
  }
  func.func @transform_4(%arg0: i32, %arg1: i32) -> (i32, i32) {
    %c0_i32 = arith.constant 0 : i32
    return %arg0, %arg1 : i32, i32
  }
}

</mosaic_0001>

<llo_original>
// kernel: tpu_custom_call.1
$region0: #{tpu_custom_call.1}
  #allocation0 [shape = 'u32[]', space=smem, size = 0x4, offset = 0x4, fixed_abs, tag = 'smem constant byte address 0x4 - core index']
  #allocation1 [shape = 'u32[144,128]{1,0:T(1,128)}', space=vmem, size = 0x12000, scoped, tag = 'internal scratch']
  #allocation2 [shape = 'f32[8,134]{1,0:T(8,128)}', space=vmem, size = 0x2000, scoped, tag = 'scratch operand']
  #allocation3 [shape = 'f32[8,134]{1,0:T(8,128)}', space=vmem, size = 0x2000, scoped, tag = 'scratch operand']
  %s0 = inlined_call_operand.vmem [shape: f32[8,4], index: 0, kind: input, shape index: {}]
  %s1 = inlined_call_operand.hbm [shape: f32[8,384], index: 1, kind: input, shape index: {}]
  %s2 = inlined_call_operand.hbm [shape: f32[8,384], index: 2, kind: input, shape index: {}]
  %s3 = inlined_call_operand.hbm [shape: f32[8,384], index: 3, kind: input, shape index: {}]
  %s4 = inlined_call_operand.hbm [shape: f32[8,128], index: 4, kind: output, shape index: {}]
  %s5 = sld [smem:[#allocation0]]
  $region42: #{tpu_custom_call.1} parent=0
    _
  %s7 = ssub.s32 1, %s5
  %s8 = scalar_select 0, %s7, %s5
  $region1: #{tpu_custom_call.1} parent=0
    #allocation4 [shape = 'u8[4096]{0}', space=vmem, size = 0x1000, scoped, tag = 'input window, operand 1, single buffered']
    #allocation5 [shape = 's32[1]{0}', space=sflag, size = 0x4, scoped, tag = 'scoped memory for tpu_custom_call.1']
    #allocation6 [shape = 's32[1]{0}', space=sflag, size = 0x4, scoped, tag = 'scoped memory for tpu_custom_call.1']
    #allocation7 [shape = 'u8[4096]{0}', space=vmem, size = 0x1000, scoped, tag = 'input window, operand 2, single buffered']
    #allocation8 [shape = 's32[1]{0}', space=sflag, size = 0x4, scoped, tag = 'scoped memory for tpu_custom_call.1']
    #allocation9 [shape = 'u8[4096]{0}', space=vmem, size = 0x1000, scoped, tag = 'input window, operand 3, single buffered']
    #allocation10 [shape = 'u8[4096]{0}', space=vmem, size = 0x1000, scoped, tag = 'output window, operand 0, single buffered']
    %9 = vsyncpa [#allocation5], 0
    %10 = vsyncpa [#allocation8], 0
    %11 = vsyncpa [#allocation6], 0
    // Predicated region
    $region2: #{tpu_custom_call.1} parent=1 // pred_check
      _
    $region3: #{tpu_custom_call.1} parent=1 // pred_check_branch
      %13 = sbr.rel (0) target = $region5
    $region4: #{tpu_custom_call.1} parent=1 // pred_region
      _
    $region5: #{tpu_custom_call.1} parent=1 // pred_fallthru
      _
    // Predicated region
    $region6: #{tpu_custom_call.1} parent=1 // pred_check
      _
    $region7: #{tpu_custom_call.1} parent=1 // pred_check_branch
      %15 = sbr.rel (0) target = $region9
    $region8: #{tpu_custom_call.1} parent=1 // pred_region
      %p16 = scmp.eq.s32.totalorder 0, 0
      %s17 = ssub.s32 0, 1
      %s18 = scalar_select %p16, 2, %s17
      %s20 = ssub.s32 128, 128
      %21 = vsyncadd [#allocation5], %s20
      %s22 = smul.addr %s18, 128
      %s23 = scalar_lea.hbm %s1, %s22
      %s25 = sshll.u32 [#allocation4], 4
      %s26 = int_to_ptr.vmem [resolvable:$true] %s25
      %28 = dma.hbm_to_vmem [thread:$0]  %s23, 128, %s26, [#allocation5]
    $region9: #{tpu_custom_call.1} parent=1 // pred_fallthru
      _
    // Predicated region
    $region10: #{tpu_custom_call.1} parent=1 // pred_check
      _
    $region11: #{tpu_custom_call.1} parent=1 // pred_check_branch
      %30 = sbr.rel (0) target = $region13
    $region12: #{tpu_custom_call.1} parent=1 // pred_region
      %s32 = ssub.s32 128, 128
      %33 = vsyncadd [#allocation8], %s32
      %s35 = sshll.u32 [#allocation7], 4
      %s36 = int_to_ptr.vmem [resolvable:$true] %s35
      %38 = dma.hbm_to_vmem [thread:$0]  %s2, 128, %s36, [#allocation8]
    $region13: #{tpu_custom_call.1} parent=1 // pred_fallthru
      _
    // Predicated region
    $region14: #{tpu_custom_call.1} parent=1 // pred_check
      _
    $region15: #{tpu_custom_call.1} parent=1 // pred_check_branch
      %40 = sbr.rel (0) target = $region17
    $region16: #{tpu_custom_call.1} parent=1 // pred_region
      %s41 = sadd.s32 0, 1
      %s43 = ssub.s32 128, 128
      %44 = vsyncadd [#allocation8], %s43
      %s45 = smul.addr %s41, 128
      %s46 = scalar_lea.hbm %s3, %s45
      %s48 = sshll.u32 [#allocation9], 4
      %s49 = int_to_ptr.vmem [resolvable:$true] %s48
      %51 = dma.hbm_to_vmem [thread:$0]  %s46, 128, %s49, [#allocation8]
    $region17: #{tpu_custom_call.1} parent=1 // pred_fallthru
      _
    // Predicated region
    $region18: #{tpu_custom_call.1} parent=1 // pred_check
      _
    $region19: #{tpu_custom_call.1} parent=1 // pred_check_branch
      %53 = sbr.rel (0) target = $region21
    $region20: #{tpu_custom_call.1} parent=1 // pred_region
      %54 = dma.done [#allocation5], 128
    $region21: #{tpu_custom_call.1} parent=1 // pred_fallthru
      _
    // Predicated region
    $region22: #{tpu_custom_call.1} parent=1 // pred_check
      _
    $region23: #{tpu_custom_call.1} parent=1 // pred_check_branch
      %56 = sbr.rel (0) target = $region25
    $region24: #{tpu_custom_call.1} parent=1 // pred_region
      %57 = dma.done [#allocation8], 128
    $region25: #{tpu_custom_call.1} parent=1 // pred_fallthru
      _
    // Predicated region
    $region26: #{tpu_custom_call.1} parent=1 // pred_check
      _
    $region27: #{tpu_custom_call.1} parent=1 // pred_check_branch
      %59 = sbr.rel (0) target = $region29
    $region28: #{tpu_custom_call.1} parent=1 // pred_region
      %60 = dma.done [#allocation8], 128
    $region29: #{tpu_custom_call.1} parent=1 // pred_fallthru
      _
    %p61 = scmp.eq.s32.totalorder 0, 0
    %s62 = ssub.s32 0, 1
    %s63 = scalar_select %p61, 2, %s62
    %s64 = sadd.s32 0, 1
    %s65 = smul.u32 0, 128
    %v66 = vld [vmem:[%s0] sm:$0xff]
    %v67 = vld [vmem:[#allocation7] sm:$0xff]
    %v68 = vmul.f32 %v67, 0.018778928
    %v69 = vmul.f32 %v67, 0.004057933
    %v70 = vmul.f32 %v67, -0.11531475
    %72 = vrot.lane.b32.xlu0 %v70, 1
    %v73 = vpop.permute.xlu0 %72
    %v75 = vadd.f32 %v68, %v73
    %v76 = vmul.f32 %v67, -0.05108693
    %78 = vrot.lane.b32.xlu0 %v76, 1
    %v79 = vpop.permute.xlu0 %78
    %v81 = vadd.f32 %v69, %v79
    %v82 = vmul.f32 %v67, 0.8864196
    %84 = vrot.lane.b32.xlu0 %v82, 2
    %v85 = vpop.permute.xlu0 %84
    %v87 = vadd.f32 %v75, %v85
    %v88 = vmul.f32 %v67, 0.25714523
    %90 = vrot.lane.b32.xlu0 %v88, 2
    %v91 = vpop.permute.xlu0 %90
    %v93 = vadd.f32 %v81, %v91
    %94 = vrot.lane.b32.xlu0 %v88, 3
    %v95 = vpop.permute.xlu0 %94
    %v97 = vadd.f32 %v87, %v95
    %98 = vrot.lane.b32.xlu0 %v82, 3
    %v99 = vpop.permute.xlu0 %98
    %v101 = vadd.f32 %v93, %v99
    %102 = vrot.lane.b32.xlu0 %v76, 4
    %v103 = vpop.permute.xlu0 %102
    %v105 = vadd.f32 %v97, %v103
    %106 = vrot.lane.b32.xlu0 %v70, 4
    %v107 = vpop.permute.xlu0 %106
    %v109 = vadd.f32 %v101, %v107
    %111 = vrot.lane.b32.xlu0 %v69, 5
    %v112 = vpop.permute.xlu0 %111
    %v114 = vadd.f32 %v105, %v112
    %116 = vrot.lane.b32.xlu0 %v68, 5
    %v117 = vpop.permute.xlu0 %116
    %v119 = vadd.f32 %v109, %v117
    %121 = vset.pattern.permute.xlu0 0
    %122 = vperm.xlu0 %121, %v66
    %v123 = vpop.permute.xlu0 %122
    %v125 = vmul.f32 %v114, %v123
    %v126 = vand.u32 2147483647, %v125
    %vm127 = vcmp.le.f32.partialorder %v126, 0.7853982
    %vm128 = vcmp.lt.s32.totalorder %v125, 0
    %v129 = vand.u32 %v125, 2139095040
    %v130 = vshrl.u32 %v129, 23
    %v131 = vsub.s32 %v130, 127
    %v132 = vand.u32 2147483647, %v125
    %v133 = vand.u32 %v132, 8388607
    %v134 = vor.u32 %v133, 8388608
    %v135 = vsub.s32 0, %v134
    %v136 = vadd.s32 %v131, 1
    %vm137 = vcmp.gt.s32.totalorder %v136, 0
    %v138 = vsel %vm137, %v136, 0
    %v139 = vshrl.u32 %v138, 5
    %v140 = vand.u32 %v138, 31
    %v141 = vsub.s32 32, %v140
    %v142 = vshrl.u32 683565275, %v141
    %v143 = vshll.u32 683565275, %v140
    %v144 = vshrl.u32 2475754826, %v141
    %v145 = vor.u32 %v143, %v144
    %v146 = vshll.u32 2475754826, %v140
    %v147 = vshrl.u32 2131351028, %v141
    %v148 = vor.u32 %v146, %v147
    %v149 = vshll.u32 2131351028, %v140
    %v150 = vshrl.u32 2102212464, %v141
    %v151 = vor.u32 %v149, %v150
    %v152 = vshll.u32 2102212464, %v140
    %v153 = vshrl.u32 920167782, %v141
    %v154 = vor.u32 %v152, %v153
    %v155 = vshll.u32 920167782, %v140
    %v156 = vshrl.u32 1326507024, %v141
    %v157 = vor.u32 %v155, %v156
    %vm158 = vcmp.lt.s32.totalorder %v139, 1
    %vm159 = vcmp.lt.s32.totalorder %v139, 2
    %vm160 = vcmp.lt.s32.totalorder %v139, 3
    %vm161 = vcmp.lt.s32.totalorder %v139, 4
    %v162 = vsel %vm158, %v142, %v145
    %v163 = vsel %vm161, %v151, 2102212464
    %v164 = vsel %vm160, %v148, %v163
    %v165 = vsel %vm159, %v162, %v164
    %v166 = vsel %vm158, %v145, %v148
    %v167 = vsel %vm161, %v154, 920167782
    %v168 = vsel %vm160, %v151, %v167
    %v169 = vsel %vm159, %v166, %v168
    %v170 = vsel %vm158, %v148, %v151
    %v171 = vsel %vm161, %v157, 1326507024
    %v172 = vsel %vm160, %v154, %v171
    %v173 = vsel %vm159, %v170, %v172
    %v174 = vshll.u32 %v134, 8
    %v175 = vmul.u32.u64.compose %v174, %v173
    %v176 = vextract.low.u32 %v175
    %v177 = vextract.high.u32 %v175
    %v178 = vmul.u32.u64.compose %v174, %v169
    %v179 = vextract.low.u32 %v178
    %v180 = vextract.high.u32 %v178
    %v181 = vmul.u32 %v174, %v165
    %v182 = vadd.s32 %v177, %v179
    %vm183 = vc.u32 %v177, %v179
    %v184 = vadd.s32 %v180, 1
    %v185 = vsel %vm183, %v184, %v180
    %v186 = vadd.s32 %v181, %v185
    %v187 = vadd.s32 %v186, 536870912
    %v188 = vshrl.u32 %v187, 30
    %v189 = vshll.u32 %v188, 30
    %v190 = vsub.s32 %v186, %v189
    %vm191 = vcmp.lt.s32.totalorder %v190, 0
    %v192 = vsub.s32 0, %v190
    %v193 = vsel %vm191, %v192, %v190
    %v194 = vclz %v193
    %v195 = vsub.s32 %v194, 2
    %vm196 = vcmp.gt.s32.totalorder 0, %v195
    %v197 = vsel %vm196, 0, %v195
    %v198 = vsub.s32 32, %v197
    %v199 = vshll.u32 %v190, %v197
    %v200 = vshrl.u32 %v182, %v198
    %v201 = vor.u32 %v199, %v200
    %v202 = vsub.s32 4294967266, %v197
    %v203 = vadd.s32 %v202, 127
    %v204 = vshll.u32 %v203, 23
    %v205 = vor.u32 4788187, %v204
    %v206 = vand.u32 2147483647, %v205
    %v208 = vcvt.s32.f32 %v201
    %v209 = vmul.f32 %v208, %v206
    %v210 = vxor.u32 %v209, 2147483648
    %v211 = vsel %vm128, %v210, %v209
    %v212 = vsub.s32 4, %v188
    %v213 = vsel %vm128, %v212, %v188
    %v214 = vsel %vm127, %v125, %v211
    %v215 = vsel %vm127, 0, %v213
    %v216 = vcosq.f32.pop %v214
    %v217 = vsinq.f32.pop %v214
    %vm218 = vweird.f32 %v125
    %v219 = vadd.s32 %v215, 3
    %v220 = vand.u32 %v219, 3
    %vm221 = vcmp.lt.s32.totalorder %v220, 2
    %vm222 = vcmp.eq.s32.totalorder %v220, 0
    %v223 = vxor.u32 %v217, 2147483648
    %v224 = vsel %vm222, %v216, %v223
    %vm225 = vcmp.eq.s32.totalorder %v220, 2
    %v226 = vxor.u32 %v216, 2147483648
    %v227 = vsel %vm225, %v226, %v217
    %v228 = vsel %vm221, %v224, %v227
    %v229 = vsel %vm218, nan, %v228
    %v230 = vmul.f32 %v119, %v123
    %v231 = vand.u32 2147483647, %v230
    %vm232 = vcmp.le.f32.partialorder %v231, 0.7853982
    %vm233 = vcmp.lt.s32.totalorder %v230, 0
    %v234 = vand.u32 %v230, 2139095040
    %v235 = vshrl.u32 %v234, 23
    %v236 = vsub.s32 %v235, 127
    %v237 = vand.u32 2147483647, %v230
    %v238 = vand.u32 %v237, 8388607
    %v239 = vor.u32 %v238, 8388608
    %v240 = vsub.s32 0, %v239
    %v241 = vadd.s32 %v236, 1
    %vm242 = vcmp.gt.s32.totalorder %v241, 0
    %v243 = vsel %vm242, %v241, 0
    %v244 = vshrl.u32 %v243, 5
    %v245 = vand.u32 %v243, 31
    %v246 = vsub.s32 32, %v245
    %v247 = vshrl.u32 683565275, %v246
    %v248 = vshll.u32 683565275, %v245
    %v249 = vshrl.u32 2475754826, %v246
    %v250 = vor.u32 %v248, %v249
    %v251 = vshll.u32 2475754826, %v245
    %v252 = vshrl.u32 2131351028, %v246
    %v253 = vor.u32 %v251, %v252
    %v254 = vshll.u32 2131351028, %v245
    %v255 = vshrl.u32 2102212464, %v246
    %v256 = vor.u32 %v254, %v255
    %v257 = vshll.u32 2102212464, %v245
    %v258 = vshrl.u32 920167782, %v246
    %v259 = vor.u32 %v257, %v258
    %v260 = vshll.u32 920167782, %v245
    %v261 = vshrl.u32 1326507024, %v246
    %v262 = vor.u32 %v260, %v261
    %vm263 = vcmp.lt.s32.totalorder %v244, 1
    %vm264 = vcmp.lt.s32.totalorder %v244, 2
    %vm265 = vcmp.lt.s32.totalorder %v244, 3
    %vm266 = vcmp.lt.s32.totalorder %v244, 4
    %v267 = vsel %vm263, %v247, %v250
    %v268 = vsel %vm266, %v256, 2102212464
    %v269 = vsel %vm265, %v253, %v268
    %v270 = vsel %vm264, %v267, %v269
    %v271 = vsel %vm263, %v250, %v253
    %v272 = vsel %vm266, %v259, 920167782
    %v273 = vsel %vm265, %v256, %v272
    %v274 = vsel %vm264, %v271, %v273
    %v275 = vsel %vm263, %v253, %v256
    %v276 = vsel %vm266, %v262, 1326507024
    %v277 = vsel %vm265, %v259, %v276
    %v278 = vsel %vm264, %v275, %v277
    %v279 = vshll.u32 %v239, 8
    %v280 = vmul.u32.u64.compose %v279, %v278
    %v281 = vextract.low.u32 %v280
    %v282 = vextract.high.u32 %v280
    %v283 = vmul.u32.u64.compose %v279, %v274
    %v284 = vextract.low.u32 %v283
    %v285 = vextract.high.u32 %v283
    %v286 = vmul.u32 %v279, %v270
    %v287 = vadd.s32 %v282, %v284
    %vm288 = vc.u32 %v282, %v284
    %v289 = vadd.s32 %v285, 1
    %v290 = vsel %vm288, %v289, %v285
    %v291 = vadd.s32 %v286, %v290
    %v292 = vadd.s32 %v291, 536870912
    %v293 = vshrl.u32 %v292, 30
    %v294 = vshll.u32 %v293, 30
    %v295 = vsub.s32 %v291, %v294
    %vm296 = vcmp.lt.s32.totalorder %v295, 0
    %v297 = vsub.s32 0, %v295
    %v298 = vsel %vm296, %v297, %v295
    %v299 = vclz %v298
    %v300 = vsub.s32 %v299, 2
    %vm301 = vcmp.gt.s32.totalorder 0, %v300
    %v302 = vsel %vm301, 0, %v300
    %v303 = vsub.s32 32, %v302
    %v304 = vshll.u32 %v295, %v302
    %v305 = vshrl.u32 %v287, %v303
    %v306 = vor.u32 %v304, %v305
    %v307 = vsub.s32 4294967266, %v302
    %v308 = vadd.s32 %v307, 127
    %v309 = vshll.u32 %v308, 23
    %v310 = vor.u32 4788187, %v309
    %v311 = vand.u32 2147483647, %v310
    %v313 = vcvt.s32.f32 %v306
    %v314 = vmul.f32 %v313, %v311
    %v315 = vxor.u32 %v314, 2147483648
    %v316 = vsel %vm233, %v315, %v314
    %v317 = vsub.s32 4, %v293
    %v318 = vsel %vm233, %v317, %v293
    %v319 = vsel %vm232, %v230, %v316
    %v320 = vsel %vm232, 0, %v318
    %v321 = vcosq.f32.pop %v319
    %v322 = vsinq.f32.pop %v319
    %vm323 = vweird.f32 %v230
    %v324 = vadd.s32 %v320, 3
    %v325 = vand.u32 %v324, 3
    %vm326 = vcmp.lt.s32.totalorder %v325, 2
    %vm327 = vcmp.eq.s32.totalorder %v325, 0
    %v328 = vxor.u32 %v322, 2147483648
    %v329 = vsel %vm327, %v321, %v328
    %vm330 = vcmp.eq.s32.totalorder %v325, 2
    %v331 = vxor.u32 %v321, 2147483648
    %v332 = vsel %vm330, %v331, %v322
    %v333 = vsel %vm326, %v329, %v332
    %v334 = vsel %vm323, nan, %v333
    %v335 = vmul.f32 %v229, %v229
    %336 = vset.pattern.permute.xlu0 1
    %337 = vperm.xlu0 %336, %v66
    %v338 = vpop.permute.xlu0 %337
    %v340 = vmul.f32 %v338, %v335
    %v341 = vadd.f32 %v114, %v340
    %v342 = vmul.f32 %v334, %v334
    %v343 = vmul.f32 %v338, %v342
    %v344 = vadd.f32 %v119, %v343
    %346 = vrot.lane.b32.xlu0 %v341, 1
    %v347 = vpop.permute.xlu0 %346
    %vm349 = vcmask 1047600
    %350 = vst.msk [vmem:[#allocation2] sm:$0xff] %vm349, %v347
    %351 = vst.msk [vmem:[#allocation3] sm:$0xff] %vm349, %v344
    %v352 = vld [vmem:[#allocation4] sm:$0xff]
    %v353 = vld [vmem:[#allocation7] sm:$0xff]
    %355 = vrot.lane.b32.xlu0 %v352, 8
    %v356 = vpop.permute.xlu0 %355
    %359 = vrot.lane.b32.xlu0 %v353, 8
    %v360 = vpop.permute.xlu0 %359
    %vm362 = vcmask 64512
    %v363 = vsel %vm362, %v356, %v360
    %v364 = vmul.f32 %v363, 0.018778928
    %v365 = vmul.f32 %v363, 0.004057933
    %v366 = vmul.f32 %v363, -0.11531475
    %368 = vrot.lane.b32.xlu0 %v366, 1
    %v369 = vpop.permute.xlu0 %368
    %v371 = vadd.f32 %v364, %v369
    %v372 = vmul.f32 %v363, -0.05108693
    %374 = vrot.lane.b32.xlu0 %v372, 1
    %v375 = vpop.permute.xlu0 %374
    %v377 = vadd.f32 %v365, %v375
    %v378 = vmul.f32 %v363, 0.8864196
    %380 = vrot.lane.b32.xlu0 %v378, 2
    %v381 = vpop.permute.xlu0 %380
    %v383 = vadd.f32 %v371, %v381
    %v384 = vmul.f32 %v363, 0.25714523
    %386 = vrot.lane.b32.xlu0 %v384, 2
    %v387 = vpop.permute.xlu0 %386
    %v389 = vadd.f32 %v377, %v387
    %390 = vrot.lane.b32.xlu0 %v384, 3
    %v391 = vpop.permute.xlu0 %390
    %v393 = vadd.f32 %v383, %v391
    %394 = vrot.lane.b32.xlu0 %v378, 3
    %v395 = vpop.permute.xlu0 %394
    %v397 = vadd.f32 %v389, %v395
    %398 = vrot.lane.b32.xlu0 %v372, 4
    %v399 = vpop.permute.xlu0 %398
    %v401 = vadd.f32 %v393, %v399
    %402 = vrot.lane.b32.xlu0 %v366, 4
    %v403 = vpop.permute.xlu0 %402
    %v405 = vadd.f32 %v397, %v403
    %407 = vrot.lane.b32.xlu0 %v365, 5
    %v408 = vpop.permute.xlu0 %407
    %v410 = vadd.f32 %v401, %v408
    %412 = vrot.lane.b32.xlu0 %v364, 5
    %v413 = vpop.permute.xlu0 %412
    %v415 = vadd.f32 %v405, %v413
    %v416 = vmul.f32 %v410, %v123
    %v417 = vand.u32 2147483647, %v416
    %vm418 = vcmp.le.f32.partialorder %v417, 0.7853982
    %vm419 = vcmp.lt.s32.totalorder %v416, 0
    %v420 = vand.u32 %v416, 2139095040
    %v421 = vshrl.u32 %v420, 23
    %v422 = vsub.s32 %v421, 127
    %v423 = vand.u32 2147483647, %v416
    %v424 = vand.u32 %v423, 8388607
    %v425 = vor.u32 %v424, 8388608
    %v426 = vsub.s32 0, %v425
    %v427 = vadd.s32 %v422, 1
    %vm428 = vcmp.gt.s32.totalorder %v427, 0
    %v429 = vsel %vm428, %v427, 0
    %v430 = vshrl.u32 %v429, 5
    %v431 = vand.u32 %v429, 31
    %v432 = vsub.s32 32, %v431
    %v433 = vshrl.u32 683565275, %v432
    %v434 = vshll.u32 683565275, %v431
    %v435 = vshrl.u32 2475754826, %v432
    %v436 = vor.u32 %v434, %v435
    %v437 = vshll.u32 2475754826, %v431
    %v438 = vshrl.u32 2131351028, %v432
    %v439 = vor.u32 %v437, %v438
    %v440 = vshll.u32 2131351028, %v431
    %v441 = vshrl.u32 2102212464, %v432
    %v442 = vor.u32 %v440, %v441
    %v443 = vshll.u32 2102212464, %v431
    %v444 = vshrl.u32 920167782, %v432
    %v445 = vor.u32 %v443, %v444
    %v446 = vshll.u32 920167782, %v431
    %v447 = vshrl.u32 1326507024, %v432
    %v448 = vor.u32 %v446, %v447
    %vm449 = vcmp.lt.s32.totalorder %v430, 1
    %vm450 = vcmp.lt.s32.totalorder %v430, 2
    %vm451 = vcmp.lt.s32.totalorder %v430, 3
    %vm452 = vcmp.lt.s32.totalorder %v430, 4
    %v453 = vsel %vm449, %v433, %v436
    %v454 = vsel %vm452, %v442, 2102212464
    %v455 = vsel %vm451, %v439, %v454
    %v456 = vsel %vm450, %v453, %v455
    %v457 = vsel %vm449, %v436, %v439
    %v458 = vsel %vm452, %v445, 920167782
    %v459 = vsel %vm451, %v442, %v458
    %v460 = vsel %vm450, %v457, %v459
    %v461 = vsel %vm449, %v439, %v442
    %v462 = vsel %vm452, %v448, 1326507024
    %v463 = vsel %vm451, %v445, %v462
    %v464 = vsel %vm450, %v461, %v463
    %v465 = vshll.u32 %v425, 8
    %v466 = vmul.u32.u64.compose %v465, %v464
    %v467 = vextract.low.u32 %v466
    %v468 = vextract.high.u32 %v466
    %v469 = vmul.u32.u64.compose %v465, %v460
    %v470 = vextract.low.u32 %v469
    %v471 = vextract.high.u32 %v469
    %v472 = vmul.u32 %v465, %v456
    %v473 = vadd.s32 %v468, %v470
    %vm474 = vc.u32 %v468, %v470
    %v475 = vadd.s32 %v471, 1
    %v476 = vsel %vm474, %v475, %v471
    %v477 = vadd.s32 %v472, %v476
    %v478 = vadd.s32 %v477, 536870912
    %v479 = vshrl.u32 %v478, 30
    %v480 = vshll.u32 %v479, 30
    %v481 = vsub.s32 %v477, %v480
    %vm482 = vcmp.lt.s32.totalorder %v481, 0
    %v483 = vsub.s32 0, %v481
    %v484 = vsel %vm482, %v483, %v481
    %v485 = vclz %v484
    %v486 = vsub.s32 %v485, 2
    %vm487 = vcmp.gt.s32.totalorder 0, %v486
    %v488 = vsel %vm487, 0, %v486
    %v489 = vsub.s32 32, %v488
    %v490 = vshll.u32 %v481, %v488
    %v491 = vshrl.u32 %v473, %v489
    %v492 = vor.u32 %v490, %v491
    %v493 = vsub.s32 4294967266, %v488
    %v494 = vadd.s32 %v493, 127
    %v495 = vshll.u32 %v494, 23
    %v496 = vor.u32 4788187, %v495
    %v497 = vand.u32 2147483647, %v496
    %v499 = vcvt.s32.f32 %v492
    %v500 = vmul.f32 %v499, %v497
    %v501 = vxor.u32 %v500, 2147483648
    %v502 = vsel %vm419, %v501, %v500
    %v503 = vsub.s32 4, %v479
    %v504 = vsel %vm419, %v503, %v479
    %v505 = vsel %vm418, %v416, %v502
    %v506 = vsel %vm418, 0, %v504
    %v507 = vcosq.f32.pop %v505
    %v508 = vsinq.f32.pop %v505
    %vm509 = vweird.f32 %v416
    %v510 = vadd.s32 %v506, 3
    %v511 = vand.u32 %v510, 3
    %vm512 = vcmp.lt.s32.totalorder %v511, 2
    %vm513 = vcmp.eq.s32.totalorder %v511, 0
    %v514 = vxor.u32 %v508, 2147483648
    %v515 = vsel %vm513, %v507, %v514
    %vm516 = vcmp.eq.s32.totalorder %v511, 2
    %v517 = vxor.u32 %v507, 2147483648
    %v518 = vsel %vm516, %v517, %v508
    %v519 = vsel %vm512, %v515, %v518
    %v520 = vsel %vm509, nan, %v519
    %v521 = vmul.f32 %v415, %v123
    %v522 = vand.u32 2147483647, %v521
    %vm523 = vcmp.le.f32.partialorder %v522, 0.7853982
    %vm524 = vcmp.lt.s32.totalorder %v521, 0
    %v525 = vand.u32 %v521, 2139095040
    %v526 = vshrl.u32 %v525, 23
    %v527 = vsub.s32 %v526, 127
    %v528 = vand.u32 2147483647, %v521
    %v529 = vand.u32 %v528, 8388607
    %v530 = vor.u32 %v529, 8388608
    %v531 = vsub.s32 0, %v530
    %v532 = vadd.s32 %v527, 1
    %vm533 = vcmp.gt.s32.totalorder %v532, 0
    %v534 = vsel %vm533, %v532, 0
    %v535 = vshrl.u32 %v534, 5
    %v536 = vand.u32 %v534, 31
    %v537 = vsub.s32 32, %v536
    %v538 = vshrl.u32 683565275, %v537
    %v539 = vshll.u32 683565275, %v536
    %v540 = vshrl.u32 2475754826, %v537
    %v541 = vor.u32 %v539, %v540
    %v542 = vshll.u32 2475754826, %v536
    %v543 = vshrl.u32 2131351028, %v537
    %v544 = vor.u32 %v542, %v543
    %v545 = vshll.u32 2131351028, %v536
    %v546 = vshrl.u32 2102212464, %v537
    %v547 = vor.u32 %v545, %v546
    %v548 = vshll.u32 2102212464, %v536
    %v549 = vshrl.u32 920167782, %v537
    %v550 = vor.u32 %v548, %v549
    %v551 = vshll.u32 920167782, %v536
    %v552 = vshrl.u32 1326507024, %v537
    %v553 = vor.u32 %v551, %v552
    %vm554 = vcmp.lt.s32.totalorder %v535, 1
    %vm555 = vcmp.lt.s32.totalorder %v535, 2
    %vm556 = vcmp.lt.s32.totalorder %v535, 3
    %vm557 = vcmp.lt.s32.totalorder %v535, 4
    %v558 = vsel %vm554, %v538, %v541
    %v559 = vsel %vm557, %v547, 2102212464
    %v560 = vsel %vm556, %v544, %v559
    %v561 = vsel %vm555, %v558, %v560
    %v562 = vsel %vm554, %v541, %v544
    %v563 = vsel %vm557, %v550, 920167782
    %v564 = vsel %vm556, %v547, %v563
    %v565 = vsel %vm555, %v562, %v564
    %v566 = vsel %vm554, %v544, %v547
    %v567 = vsel %vm557, %v553, 1326507024
    %v568 = vsel %vm556, %v550, %v567
    %v569 = vsel %vm555, %v566, %v568
    %v570 = vshll.u32 %v530, 8
    %v571 = vmul.u32.u64.compose %v570, %v569
    %v572 = vextract.low.u32 %v571
    %v573 = vextract.high.u32 %v571
    %v574 = vmul.u32.u64.compose %v570, %v565
    %v575 = vextract.low.u32 %v574
    %v576 = vextract.high.u32 %v574
    %v577 = vmul.u32 %v570, %v561
    %v578 = vadd.s32 %v573, %v575
    %vm579 = vc.u32 %v573, %v575
    %v580 = vadd.s32 %v576, 1
    %v581 = vsel %vm579, %v580, %v576
    %v582 = vadd.s32 %v577, %v581
    %v583 = vadd.s32 %v582, 536870912
    %v584 = vshrl.u32 %v583, 30
    %v585 = vshll.u32 %v584, 30
    %v586 = vsub.s32 %v582, %v585
    %vm587 = vcmp.lt.s32.totalorder %v586, 0
    %v588 = vsub.s32 0, %v586
    %v589 = vsel %vm587, %v588, %v586
    %v590 = vclz %v589
    %v591 = vsub.s32 %v590, 2
    %vm592 = vcmp.gt.s32.totalorder 0, %v591
    %v593 = vsel %vm592, 0, %v591
    %v594 = vsub.s32 32, %v593
    %v595 = vshll.u32 %v586, %v593
    %v596 = vshrl.u32 %v578, %v594
    %v597 = vor.u32 %v595, %v596
    %v598 = vsub.s32 4294967266, %v593
    %v599 = vadd.s32 %v598, 127
    %v600 = vshll.u32 %v599, 23
    %v601 = vor.u32 4788187, %v600
    %v602 = vand.u32 2147483647, %v601
    %v604 = vcvt.s32.f32 %v597
    %v605 = vmul.f32 %v604, %v602
    %v606 = vxor.u32 %v605, 2147483648
    %v607 = vsel %vm524, %v606, %v605
    %v608 = vsub.s32 4, %v584
    %v609 = vsel %vm524, %v608, %v584
    %v610 = vsel %vm523, %v521, %v607
    %v611 = vsel %vm523, 0, %v609
    %v612 = vcosq.f32.pop %v610
    %v613 = vsinq.f32.pop %v610
    %vm614 = vweird.f32 %v521
    %v615 = vadd.s32 %v611, 3
    %v616 = vand.u32 %v615, 3
    %vm617 = vcmp.lt.s32.totalorder %v616, 2
    %vm618 = vcmp.eq.s32.totalorder %v616, 0
    %v619 = vxor.u32 %v613, 2147483648
    %v620 = vsel %vm618, %v612, %v619
    %vm621 = vcmp.eq.s32.totalorder %v616, 2
    %v622 = vxor.u32 %v612, 2147483648
    %v623 = vsel %vm621, %v622, %v613
    %v624 = vsel %vm617, %v620, %v623
    %v625 = vsel %vm614, nan, %v624
    %v626 = vmul.f32 %v520, %v520
    %v627 = vmul.f32 %v338, %v626
    %v628 = vadd.f32 %v410, %v627
    %v629 = vmul.f32 %v625, %v625
    %v630 = vmul.f32 %v338, %v629
    %v631 = vadd.f32 %v415, %v630
    %633 = vrot.lane.b32.xlu0 %v628, 121
    %v634 = vpop.permute.xlu0 %633
    %vm636 = vcmask 48128
    %637 = vst.msk [vmem:[#allocation2] sm:$0xff] %vm636, %v634
    %639 = vrot.lane.b32.xlu0 %v631, 120
    %v640 = vpop.permute.xlu0 %639
    %642 = vst.msk [vmem:[#allocation3] sm:$0xff] %vm636, %v640
    %v643 = vld [vmem:[#allocation7] sm:$0xff]
    %v644 = vld [vmem:[#allocation9] sm:$0xff]
    %646 = vrot.lane.b32.xlu0 %v643, 8
    %v647 = vpop.permute.xlu0 %646
    %650 = vrot.lane.b32.xlu0 %v644, 8
    %v651 = vpop.permute.xlu0 %650
    %v653 = vsel %vm362, %v647, %v651
    %v654 = vmul.f32 %v653, 0.018778928
    %v655 = vmul.f32 %v653, 0.004057933
    %v656 = vmul.f32 %v653, -0.11531475
    %658 = vrot.lane.b32.xlu0 %v656, 1
    %v659 = vpop.permute.xlu0 %658
    %v661 = vadd.f32 %v654, %v659
    %v662 = vmul.f32 %v653, -0.05108693
    %664 = vrot.lane.b32.xlu0 %v662, 1
    %v665 = vpop.permute.xlu0 %664
    %v667 = vadd.f32 %v655, %v665
    %v668 = vmul.f32 %v653, 0.8864196
    %670 = vrot.lane.b32.xlu0 %v668, 2
    %v671 = vpop.permute.xlu0 %670
    %v673 = vadd.f32 %v661, %v671
    %v674 = vmul.f32 %v653, 0.25714523
    %676 = vrot.lane.b32.xlu0 %v674, 2
    %v677 = vpop.permute.xlu0 %676
    %v679 = vadd.f32 %v667, %v677
    %680 = vrot.lane.b32.xlu0 %v674, 3
    %v681 = vpop.permute.xlu0 %680
    %v683 = vadd.f32 %v673, %v681
    %684 = vrot.lane.b32.xlu0 %v668, 3
    %v685 = vpop.permute.xlu0 %684
    %v687 = vadd.f32 %v679, %v685
    %688 = vrot.lane.b32.xlu0 %v662, 4
    %v689 = vpop.permute.xlu0 %688
    %v691 = vadd.f32 %v683, %v689
    %692 = vrot.lane.b32.xlu0 %v656, 4
    %v693 = vpop.permute.xlu0 %692
    %v695 = vadd.f32 %v687, %v693
    %697 = vrot.lane.b32.xlu0 %v655, 5
    %v698 = vpop.permute.xlu0 %697
    %v700 = vadd.f32 %v691, %v698
    %702 = vrot.lane.b32.xlu0 %v654, 5
    %v703 = vpop.permute.xlu0 %702
    %v705 = vadd.f32 %v695, %v703
    %v706 = vmul.f32 %v700, %v123
    %v707 = vand.u32 2147483647, %v706
    %vm708 = vcmp.le.f32.partialorder %v707, 0.7853982
    %vm709 = vcmp.lt.s32.totalorder %v706, 0
    %v710 = vand.u32 %v706, 2139095040
    %v711 = vshrl.u32 %v710, 23
    %v712 = vsub.s32 %v711, 127
    %v713 = vand.u32 2147483647, %v706
    %v714 = vand.u32 %v713, 8388607
    %v715 = vor.u32 %v714, 8388608
    %v716 = vsub.s32 0, %v715
    %v717 = vadd.s32 %v712, 1
    %vm718 = vcmp.gt.s32.totalorder %v717, 0
    %v719 = vsel %vm718, %v717, 0
    %v720 = vshrl.u32 %v719, 5
    %v721 = vand.u32 %v719, 31
    %v722 = vsub.s32 32, %v721
    %v723 = vshrl.u32 683565275, %v722
    %v724 = vshll.u32 683565275, %v721
    %v725 = vshrl.u32 2475754826, %v722
    %v726 = vor.u32 %v724, %v725
    %v727 = vshll.u32 2475754826, %v721
    %v728 = vshrl.u32 2131351028, %v722
    %v729 = vor.u32 %v727, %v728
    %v730 = vshll.u32 2131351028, %v721
    %v731 = vshrl.u32 2102212464, %v722
    %v732 = vor.u32 %v730, %v731
    %v733 = vshll.u32 2102212464, %v721
    %v734 = vshrl.u32 920167782, %v722
    %v735 = vor.u32 %v733, %v734
    %v736 = vshll.u32 920167782, %v721
    %v737 = vshrl.u32 1326507024, %v722
    %v738 = vor.u32 %v736, %v737
    %vm739 = vcmp.lt.s32.totalorder %v720, 1
    %vm740 = vcmp.lt.s32.totalorder %v720, 2
    %vm741 = vcmp.lt.s32.totalorder %v720, 3
    %vm742 = vcmp.lt.s32.totalorder %v720, 4
    %v743 = vsel %vm739, %v723, %v726
    %v744 = vsel %vm742, %v732, 2102212464
    %v745 = vsel %vm741, %v729, %v744
    %v746 = vsel %vm740, %v743, %v745
    %v747 = vsel %vm739, %v726, %v729
    %v748 = vsel %vm742, %v735, 920167782
    %v749 = vsel %vm741, %v732, %v748
    %v750 = vsel %vm740, %v747, %v749
    %v751 = vsel %vm739, %v729, %v732
    %v752 = vsel %vm742, %v738, 1326507024
    %v753 = vsel %vm741, %v735, %v752
    %v754 = vsel %vm740, %v751, %v753
    %v755 = vshll.u32 %v715, 8
    %v756 = vmul.u32.u64.compose %v755, %v754
    %v757 = vextract.low.u32 %v756
    %v758 = vextract.high.u32 %v756
    %v759 = vmul.u32.u64.compose %v755, %v750
    %v760 = vextract.low.u32 %v759
    %v761 = vextract.high.u32 %v759
    %v762 = vmul.u32 %v755, %v746
    %v763 = vadd.s32 %v758, %v760
    %vm764 = vc.u32 %v758, %v760
    %v765 = vadd.s32 %v761, 1
    %v766 = vsel %vm764, %v765, %v761
    %v767 = vadd.s32 %v762, %v766
    %v768 = vadd.s32 %v767, 536870912
    %v769 = vshrl.u32 %v768, 30
    %v770 = vshll.u32 %v769, 30
    %v771 = vsub.s32 %v767, %v770
    %vm772 = vcmp.lt.s32.totalorder %v771, 0
    %v773 = vsub.s32 0, %v771
    %v774 = vsel %vm772, %v773, %v771
    %v775 = vclz %v774
    %v776 = vsub.s32 %v775, 2
    %vm777 = vcmp.gt.s32.totalorder 0, %v776
    %v778 = vsel %vm777, 0, %v776
    %v779 = vsub.s32 32, %v778
    %v780 = vshll.u32 %v771, %v778
    %v781 = vshrl.u32 %v763, %v779
    %v782 = vor.u32 %v780, %v781
    %v783 = vsub.s32 4294967266, %v778
    %v784 = vadd.s32 %v783, 127
    %v785 = vshll.u32 %v784, 23
    %v786 = vor.u32 4788187, %v785
    %v787 = vand.u32 2147483647, %v786
    %v789 = vcvt.s32.f32 %v782
    %v790 = vmul.f32 %v789, %v787
    %v791 = vxor.u32 %v790, 2147483648
    %v792 = vsel %vm709, %v791, %v790
    %v793 = vsub.s32 4, %v769
    %v794 = vsel %vm709, %v793, %v769
    %v795 = vsel %vm708, %v706, %v792
    %v796 = vsel %vm708, 0, %v794
    %v797 = vcosq.f32.pop %v795
    %v798 = vsinq.f32.pop %v795
    %vm799 = vweird.f32 %v706
    %v800 = vadd.s32 %v796, 3
    %v801 = vand.u32 %v800, 3
    %vm802 = vcmp.lt.s32.totalorder %v801, 2
    %vm803 = vcmp.eq.s32.totalorder %v801, 0
    %v804 = vxor.u32 %v798, 2147483648
    %v805 = vsel %vm803, %v797, %v804
    %vm806 = vcmp.eq.s32.totalorder %v801, 2
    %v807 = vxor.u32 %v797, 2147483648
    %v808 = vsel %vm806, %v807, %v798
    %v809 = vsel %vm802, %v805, %v808
    %v810 = vsel %vm799, nan, %v809
    %v811 = vmul.f32 %v705, %v123
    %v812 = vand.u32 2147483647, %v811
    %vm813 = vcmp.le.f32.partialorder %v812, 0.7853982
    %vm814 = vcmp.lt.s32.totalorder %v811, 0
    %v815 = vand.u32 %v811, 2139095040
    %v816 = vshrl.u32 %v815, 23
    %v817 = vsub.s32 %v816, 127
    %v818 = vand.u32 2147483647, %v811
    %v819 = vand.u32 %v818, 8388607
    %v820 = vor.u32 %v819, 8388608
    %v821 = vsub.s32 0, %v820
    %v822 = vadd.s32 %v817, 1
    %vm823 = vcmp.gt.s32.totalorder %v822, 0
    %v824 = vsel %vm823, %v822, 0
    %v825 = vshrl.u32 %v824, 5
    %v826 = vand.u32 %v824, 31
    %v827 = vsub.s32 32, %v826
    %v828 = vshrl.u32 683565275, %v827
    %v829 = vshll.u32 683565275, %v826
    %v830 = vshrl.u32 2475754826, %v827
    %v831 = vor.u32 %v829, %v830
    %v832 = vshll.u32 2475754826, %v826
    %v833 = vshrl.u32 2131351028, %v827
    %v834 = vor.u32 %v832, %v833
    %v835 = vshll.u32 2131351028, %v826
    %v836 = vshrl.u32 2102212464, %v827
    %v837 = vor.u32 %v835, %v836
    %v838 = vshll.u32 2102212464, %v826
    %v839 = vshrl.u32 920167782, %v827
    %v840 = vor.u32 %v838, %v839
    %v841 = vshll.u32 920167782, %v826
    %v842 = vshrl.u32 1326507024, %v827
    %v843 = vor.u32 %v841, %v842
    %vm844 = vcmp.lt.s32.totalorder %v825, 1
    %vm845 = vcmp.lt.s32.totalorder %v825, 2
    %vm846 = vcmp.lt.s32.totalorder %v825, 3
    %vm847 = vcmp.lt.s32.totalorder %v825, 4
    %v848 = vsel %vm844, %v828, %v831
    %v849 = vsel %vm847, %v837, 2102212464
    %v850 = vsel %vm846, %v834, %v849
    %v851 = vsel %vm845, %v848, %v850
    %v852 = vsel %vm844, %v831, %v834
    %v853 = vsel %vm847, %v840, 920167782
    %v854 = vsel %vm846, %v837, %v853
    %v855 = vsel %vm845, %v852, %v854
    %v856 = vsel %vm844, %v834, %v837
    %v857 = vsel %vm847, %v843, 1326507024
    %v858 = vsel %vm846, %v840, %v857
    %v859 = vsel %vm845, %v856, %v858
    %v860 = vshll.u32 %v820, 8
    %v861 = vmul.u32.u64.compose %v860, %v859
    %v862 = vextract.low.u32 %v861
    %v863 = vextract.high.u32 %v861
    %v864 = vmul.u32.u64.compose %v860, %v855
    %v865 = vextract.low.u32 %v864
    %v866 = vextract.high.u32 %v864
    %v867 = vmul.u32 %v860, %v851
    %v868 = vadd.s32 %v863, %v865
    %vm869 = vc.u32 %v863, %v865
    %v870 = vadd.s32 %v866, 1
    %v871 = vsel %vm869, %v870, %v866
    %v872 = vadd.s32 %v867, %v871
    %v873 = vadd.s32 %v872, 536870912
    %v874 = vshrl.u32 %v873, 30
    %v875 = vshll.u32 %v874, 30
    %v876 = vsub.s32 %v872, %v875
    %vm877 = vcmp.lt.s32.totalorder %v876, 0
    %v878 = vsub.s32 0, %v876
    %v879 = vsel %vm877, %v878, %v876
    %v880 = vclz %v879
    %v881 = vsub.s32 %v880, 2
    %vm882 = vcmp.gt.s32.totalorder 0, %v881
    %v883 = vsel %vm882, 0, %v881
    %v884 = vsub.s32 32, %v883
    %v885 = vshll.u32 %v876, %v883
    %v886 = vshrl.u32 %v868, %v884
    %v887 = vor.u32 %v885, %v886
    %v888 = vsub.s32 4294967266, %v883
    %v889 = vadd.s32 %v888, 127
    %v890 = vshll.u32 %v889, 23
    %v891 = vor.u32 4788187, %v890
    %v892 = vand.u32 2147483647, %v891
    %v894 = vcvt.s32.f32 %v887
    %v895 = vmul.f32 %v894, %v892
    %v896 = vxor.u32 %v895, 2147483648
    %v897 = vsel %vm814, %v896, %v895
    %v898 = vsub.s32 4, %v874
    %v899 = vsel %vm814, %v898, %v874
    %v900 = vsel %vm813, %v811, %v897
    %v901 = vsel %vm813, 0, %v899
    %v902 = vcosq.f32.pop %v900
    %v903 = vsinq.f32.pop %v900
    %vm904 = vweird.f32 %v811
    %v905 = vadd.s32 %v901, 3
    %v906 = vand.u32 %v905, 3
    %vm907 = vcmp.lt.s32.totalorder %v906, 2
    %vm908 = vcmp.eq.s32.totalorder %v906, 0
    %v909 = vxor.u32 %v903, 2147483648
    %v910 = vsel %vm908, %v902, %v909
    %vm911 = vcmp.eq.s32.totalorder %v906, 2
    %v912 = vxor.u32 %v902, 2147483648
    %v913 = vsel %vm911, %v912, %v903
    %v914 = vsel %vm907, %v910, %v913
    %v915 = vsel %vm904, nan, %v914
    %v916 = vmul.f32 %v810, %v810
    %v917 = vmul.f32 %v338, %v916
    %v918 = vadd.f32 %v700, %v917
    %v919 = vmul.f32 %v915, %v915
    %v920 = vmul.f32 %v338, %v919
    %v921 = vadd.f32 %v705, %v920
    %923 = vrot.lane.b32.xlu0 %v918, 121
    %v924 = vpop.permute.xlu0 %923
    %926 = vst.msk [vmem:[#allocation2 + $0x8] sm:$0xff] %vm636, %v924
    %928 = vrot.lane.b32.xlu0 %v921, 120
    %v929 = vpop.permute.xlu0 %928
    %931 = vst.msk [vmem:[#allocation3 + $0x8] sm:$0xff] %vm636, %v929
    %p932 = scmp.lt.s32.totalorder %s65, 3
    %s933 = sadd.s32 %s65, 130
    %p934 = scmp.gt.s32.totalorder %s933, 15
    %p935 = por %p932, %p934
    // Predicated region
    $region30: #{tpu_custom_call.1} parent=1 // pred_check
      %p936 = pneg %p935
    $region31: #{tpu_custom_call.1} parent=1 // pred_check_branch
      %938 = sbr.rel (%p936) target = $region33
    $region32: #{tpu_custom_call.1} parent=1 // pred_region
      %v939 = vlaneseq
      %v940 = vand.u32 %v939, 127
      %v941 = vadd.s32 %v940, 128
      %s942 = ssub.s32 %s65, 3
      %v943 = vstv %s942
      %v944 = vadd.s32 %v940, %v943
      %v945 = vadd.s32 %v941, %v943
      %vm946 = vcmp.lt.s32.totalorder %v944, 0
      %vm947 = vcmp.lt.s32.totalorder %v945, 0
      %vm948 = vcmp.gt.s32.totalorder %v944, 15
      %vm949 = vcmp.gt.s32.totalorder %v945, 15
      %v950 = vld [vmem:[#allocation2] sm:$0xff]
      %v951 = vld [vmem:[#allocation2 + $0x8] sm:$0xff]
      %v952 = vld [vmem:[#allocation3] sm:$0xff]
      %v953 = vld [vmem:[#allocation3 + $0x8] sm:$0xff]
      %954 = vset.pattern.permute.xlu0 3
      %955 = vperm.xlu0 %954, %v66
      %v956 = vpop.permute.xlu0 %955
      %v958 = vsel %vm948, %v956, %v950
      %v959 = vsel %vm949, %v956, %v951
      %960 = vset.pattern.permute.xlu0 2
      %961 = vperm.xlu0 %960, %v66
      %v962 = vpop.permute.xlu0 %961
      %v964 = vsel %vm946, %v962, %v958
      %v965 = vsel %vm947, %v962, %v959
      %966 = vst [vmem:[#allocation2] sm:$0xff] %v964
      %967 = vst.msk [vmem:[#allocation2 + $0x8] sm:$0xff] %vm636, %v965
      %v968 = vsel %vm948, %v956, %v952
      %v969 = vsel %vm949, %v956, %v953
      %v970 = vsel %vm946, %v962, %v968
      %v971 = vsel %vm947, %v962, %v969
      %972 = vst [vmem:[#allocation3] sm:$0xff] %v970
      %973 = vst.msk [vmem:[#allocation3 + $0x8] sm:$0xff] %vm636, %v971
    $region33: #{tpu_custom_call.1} parent=1 // pred_fallthru
      _
    %v974 = vld [vmem:[#allocation2] sm:$0xff]
    %v975 = vld [vmem:[#allocation2 + $0x8] sm:$0xff]
    %v976 = vmul.f32 %v974, 0.009389464
    %v977 = vmul.f32 %v975, 0.009389464
    %v978 = vld [vmem:[#allocation3] sm:$0xff]
    %v979 = vmul.f32 %v978, 0.0020289666
    %981 = vrot.lane.b32.xlu0 %v979, 1
    %v982 = vpop.permute.xlu0 %981
    %v984 = vadd.f32 %v976, %v982
    %v985 = vadd.f32 %v977, %v982
    %v986 = vmul.f32 %v974, -0.057657376
    %v987 = vmul.f32 %v975, -0.057657376
    %990 = vrot.lane.b32.xlu0 %v986, 127
    %v991 = vpop.permute.xlu0 %990
    %992 = vrot.lane.b32.xlu0 %v987, 127
    %v993 = vpop.permute.xlu0 %992
    %vm994 = vcmask 1039360
    %v995 = vsel %vm994, %v991, %v993
    %v998 = vadd.f32 %v984, %v995
    %v999 = vadd.f32 %v985, %v993
    %v1000 = vld [vmem:[#allocation3 + $0x8] sm:$0xff]
    %v1001 = vmul.f32 %v978, -0.025543464
    %v1002 = vmul.f32 %v1000, -0.025543464
    %v1003 = vadd.f32 %v998, %v1001
    %v1004 = vadd.f32 %v999, %v1002
    %v1005 = vmul.f32 %v974, 0.4432098
    %v1006 = vmul.f32 %v975, 0.4432098
    %1009 = vrot.lane.b32.xlu0 %v1005, 126
    %v1010 = vpop.permute.xlu0 %1009
    %1011 = vrot.lane.b32.xlu0 %v1006, 126
    %v1012 = vpop.permute.xlu0 %1011
    %vm1013 = vcmask 1031168
    %v1014 = vsel %vm1013, %v1010, %v1012
    %v1017 = vadd.f32 %v1003, %v1014
    %v1018 = vadd.f32 %v1004, %v1012
    %v1019 = vmul.f32 %v978, 0.12857261
    %v1020 = vmul.f32 %v1000, 0.12857261
    %1023 = vrot.lane.b32.xlu0 %v1019, 127
    %v1024 = vpop.permute.xlu0 %1023
    %1025 = vrot.lane.b32.xlu0 %v1020, 127
    %v1026 = vpop.permute.xlu0 %1025
    %v1027 = vsel %vm994, %v1024, %v1026
    %v1030 = vadd.f32 %v1017, %v1027
    %v1031 = vadd.f32 %v1018, %v1026
    %v1032 = vmul.f32 %v974, 0.12857261
    %v1033 = vmul.f32 %v975, 0.12857261
    %1036 = vrot.lane.b32.xlu0 %v1032, 125
    %v1037 = vpop.permute.xlu0 %1036
    %1038 = vrot.lane.b32.xlu0 %v1033, 125
    %v1039 = vpop.permute.xlu0 %1038
    %vm1040 = vcmask 1022976
    %v1041 = vsel %vm1040, %v1037, %v1039
    %v1044 = vadd.f32 %v1030, %v1041
    %v1045 = vadd.f32 %v1031, %v1039
    %v1046 = vmul.f32 %v978, 0.4432098
    %v1047 = vmul.f32 %v1000, 0.4432098
    %1050 = vrot.lane.b32.xlu0 %v1046, 126
    %v1051 = vpop.permute.xlu0 %1050
    %1052 = vrot.lane.b32.xlu0 %v1047, 126
    %v1053 = vpop.permute.xlu0 %1052
    %v1054 = vsel %vm1013, %v1051, %v1053
    %v1057 = vadd.f32 %v1044, %v1054
    %v1058 = vadd.f32 %v1045, %v1053
    %v1059 = vmul.f32 %v974, -0.025543464
    %v1060 = vmul.f32 %v975, -0.025543464
    %1063 = vrot.lane.b32.xlu0 %v1059, 124
    %v1064 = vpop.permute.xlu0 %1063
    %1065 = vrot.lane.b32.xlu0 %v1060, 124
    %v1066 = vpop.permute.xlu0 %1065
    %vm1067 = vcmask 1014784
    %v1068 = vsel %vm1067, %v1064, %v1066
    %v1071 = vadd.f32 %v1057, %v1068
    %v1072 = vadd.f32 %v1058, %v1066
    %v1073 = vmul.f32 %v978, -0.057657376
    %v1074 = vmul.f32 %v1000, -0.057657376
    %1077 = vrot.lane.b32.xlu0 %v1073, 125
    %v1078 = vpop.permute.xlu0 %1077
    %1079 = vrot.lane.b32.xlu0 %v1074, 125
    %v1080 = vpop.permute.xlu0 %1079
    %v1081 = vsel %vm1040, %v1078, %v1080
    %v1084 = vadd.f32 %v1071, %v1081
    %v1085 = vadd.f32 %v1072, %v1080
    %v1086 = vmul.f32 %v974, 0.0020289666
    %v1087 = vmul.f32 %v975, 0.0020289666
    %1090 = vrot.lane.b32.xlu0 %v1086, 123
    %v1091 = vpop.permute.xlu0 %1090
    %1092 = vrot.lane.b32.xlu0 %v1087, 123
    %v1093 = vpop.permute.xlu0 %1092
    %vm1094 = vcmask 1006592
    %v1095 = vsel %vm1094, %v1091, %v1093
    %v1098 = vadd.f32 %v1084, %v1095
    %v1099 = vadd.f32 %v1085, %v1093
    %v1100 = vmul.f32 %v978, 0.009389464
    %v1101 = vmul.f32 %v1000, 0.009389464
    %1104 = vrot.lane.b32.xlu0 %v1100, 124
    %v1105 = vpop.permute.xlu0 %1104
    %1106 = vrot.lane.b32.xlu0 %v1101, 124
    %v1107 = vpop.permute.xlu0 %1106
    %v1108 = vsel %vm1067, %v1105, %v1107
    %v1111 = vadd.f32 %v1098, %v1108
    %v1112 = vadd.f32 %v1099, %v1107
    %1115 = vrot.lane.b32.xlu0 %v1111, 127
    %v1116 = vpop.permute.xlu0 %1115
    %1117 = vrot.lane.b32.xlu0 %v1112, 127
    %v1118 = vpop.permute.xlu0 %1117
    %v1119 = vsel %vm994, %v1116, %v1118
    %1121 = vst [vmem:[#allocation10] sm:$0xff] %v1119
    // Predicated region
    $region34: #{tpu_custom_call.1} parent=1 // pred_check
      _
    $region35: #{tpu_custom_call.1} parent=1 // pred_check_branch
      %1123 = sbr.rel (0) target = $region37
    $region36: #{tpu_custom_call.1} parent=1 // pred_region
      %s1125 = ssub.s32 128, 128
      %1126 = vsyncadd [#allocation6], %s1125
      %s1128 = sshll.u32 [#allocation10], 4
      %s1129 = int_to_ptr.vmem [resolvable:$true] %s1128
      %1131 = dma.vmem_to_hbm [thread:$0]  %s1129, 128, %s4, [#allocation6]
    $region37: #{tpu_custom_call.1} parent=1 // pred_fallthru
      _
    // Predicated region
    $region38: #{tpu_custom_call.1} parent=1 // pred_check
      _
    $region39: #{tpu_custom_call.1} parent=1 // pred_check_branch
      %1133 = sbr.rel (0) target = $region41
    $region40: #{tpu_custom_call.1} parent=1 // pred_region
      %1134 = dma.done [#allocation6], 128
    $region41: #{tpu_custom_call.1} parent=1 // pred_fallthru
      _
    %1135 = vsyncpa [#allocation5], 1
    %1136 = vsyncpa [#allocation8], 1
    %1137 = vsyncpa [#allocation6], 1

</llo_original>
